<compile_context>
chip_gen: v6e
topology: v6e:2x2x1
jax: 0.10.0
libtpu: 0.0.40
codegen_flags: <defaults>
</compile_context>

<pallas_src>
import functools

import numpy as np
import jax
import jax.numpy as jnp
from jax.experimental import pallas as pl
from jax.experimental.pallas import tpu as pltpu


_TRANSCENDENTAL_ACTS = ("tanh", "sigmoid", "gelu", "elu", "celu")


# ----------------------------------------------------------------------------
# Activation helper (pure jnp; used inside the kernels and in the reference)
# ----------------------------------------------------------------------------
def _apply_act(y, act):
    if act == "leakyrelu":
        return jnp.where(y > 0, y, jnp.float32(0.01) * y)   # torch default slope 0.01
    if act == "relu":
        return jnp.maximum(y, jnp.float32(0.0))
    if act == "tanh":
        return jnp.tanh(y)
    if act == "sigmoid":
        return jax.nn.sigmoid(y)
    if act == "gelu":
        return jax.nn.gelu(y, approximate=False)             # match torch.nn.GELU (erf)
    if act in ("elu", "celu"):                                # alpha = 1.0 (torch default)
        return jnp.where(y > 0, y, jnp.expm1(y))
    return y                                                  # 'none'


# ----------------------------------------------------------------------------
# Small utilities
# ----------------------------------------------------------------------------
def _round_up(n, m):
    return ((n + m - 1) // m) * m


def _pad2(a, rows, cols):
    return jnp.pad(a, ((0, rows - a.shape[0]), (0, cols - a.shape[1])))


def _pick_tb(B, cap=512):
    """Batch tile: full dim for tiny B; >=2 grid steps for moderate B (so the
    'parallel' grid axis can shard across v7x's 2 TensorCores); 512-row cap for
    large B (VMEM-safe on v7x, amortizes per-grid-step overhead)."""
    if B <= 8:
        return max(B, 1)
    if B < 16:
        return 8
    if B < 2 * cap:
        return _round_up((B + 1) // 2, 8)
    return cap


def _pick_tile(dim_p, cap=512):
    """Largest of (cap, 256, 128) that divides a 128-multiple padded dim."""
    for t in (cap, 256, 128):
        if dim_p % t == 0:
            return t
    return dim_p


def _vmem_capacity_bytes():
    try:
        info = pltpu.get_tpu_info()
        cap = getattr(info, "vmem_capacity_bytes", None)
        if cap:
            return int(cap)
    except Exception:
        pass
    return 64 << 20          # conservative (v7x per-TC VMEM)


# ----------------------------------------------------------------------------
# Flatten the module into a static per-linear-layer plan
# ----------------------------------------------------------------------------
def _build_layer_plan(params):
    """Returns (plan, flat): plan[i] = (act_name, save_res, add_res); flat[i] = (w, b)."""
    nlin = params["nlin"]
    plan = []
    flat = []

    # Residual blocks.  Dangling-else quirk in ResBlock.__init__: nonlin_out
    # is ReLU unless nlin == 'sigmoid'.
    out_act = "sigmoid" if nlin == "sigmoid" else "relu"
    for lins in params["res_blocks"]:
        n = len(lins)
        for j, (w, b) in enumerate(lins):
            plan.append((out_act if j == n - 1 else nlin, j == 0, j == n - 1))
            flat.append((w, b))

    # Encoder MLP.
    enc = params["enc"]
    last_act = "tanh" if params["normalize_latent"] else "none"
    for j, (w, b) in enumerate(enc):
        plan.append((last_act if j == len(enc) - 1 else nlin, False, False))
        flat.append((w, b))

    return tuple(plan), flat


# ----------------------------------------------------------------------------
# Fused whole-network kernel (default path)
# ----------------------------------------------------------------------------
def _make_fused_kernel(layer_plan, mxu_dtype):
    def kernel(x_ref, *refs):
        o_ref = refs[-1]
        p_refs = refs[:-1]                       # w0, b0, w1, b1, ...
        x = x_ref[...].astype(jnp.float32)
        res = None
        for li, (act, save_res, add_res) in enumerate(layer_plan):
            w = p_refs[2 * li][...]              # mxu_dtype (bf16 by default)
            b = p_refs[2 * li + 1][...]          # f32
            if save_res:
                res = x                          # ResBlock input (x_inp.clone())
            y = jnp.dot(x.astype(mxu_dtype), w,
                        preferred_element_type=jnp.float32) + b
            if add_res:
                y = y + res                      # residual add before nonlin_out
            x = _apply_act(y, act)
        o_ref[...] = x.astype(o_ref.dtype)

    return kernel


def _fused_call(plan, padded_params, xp, pdims, tb, out_dtype, mxu_dtype,
                single_buffer_weights, vmem_limit, cost):
    B = xp.shape[0]
    grid = (pl.cdiv(B, tb),)                     # partial tail tile handled by masked stores

    def const_spec(shape):
        # Constant block index across the grid -> a single VMEM buffer suffices.
        if single_buffer_weights:
            return pl.BlockSpec(shape, lambda i: (0, 0), pipeline_mode=pl.Buffered(1))
        return pl.BlockSpec(shape, lambda i: (0, 0))

    in_specs = [pl.BlockSpec((tb, pdims[0]), lambda i: (i, 0))]
    for li in range(len(plan)):
        in_specs.append(const_spec((pdims[li], pdims[li + 1])))   # weight
        in_specs.append(const_spec((1, pdims[li + 1])))           # bias
    out_specs = pl.BlockSpec((tb, pdims[-1]), lambda i: (i, 0))

    return pl.pallas_call(
        _make_fused_kernel(plan, mxu_dtype),
        out_shape=jax.ShapeDtypeStruct((B, pdims[-1]), out_dtype),
        grid=grid,
        in_specs=in_specs,
        out_specs=out_specs,
        compiler_params=pltpu.CompilerParams(
            dimension_semantics=("parallel",),
            vmem_limit_bytes=vmem_limit),
        cost_estimate=cost,
    )(xp, *padded_params)


# ----------------------------------------------------------------------------
# Per-layer fallback path (weights streamed block-by-block; large i_dim / v7x)
# ----------------------------------------------------------------------------
def _layer_kernel(*refs, act, has_res, mxu_dtype):
    if has_res:
        x_ref, w_ref, b_ref, r_ref, o_ref, acc_ref = refs
    else:
        x_ref, w_ref, b_ref, o_ref, acc_ref = refs
        r_ref = None
    k = pl.program_id(2)

    @pl.when(k == 0)
    def _():
        acc_ref[...] = jnp.zeros_like(acc_ref)

    acc_ref[...] += jnp.dot(x_ref[...].astype(mxu_dtype), w_ref[...],
                            preferred_element_type=jnp.float32)

    @pl.when(k == pl.num_programs(2) - 1)
    def _():
        y = acc_ref[...] + b_ref[...]
        if has_res:
            y = y + r_ref[...].astype(jnp.float32)
        o_ref[...] = _apply_act(y, act).astype(o_ref.dtype)


def _layer_call(x, w, b, res, act, tb, mxu_dtype):
    B, din_p = x.shape
    dout_p = w.shape[1]
    tk = _pick_tile(din_p)
    tn = _pick_tile(dout_p)
    grid = (pl.cdiv(B, tb), dout_p // tn, din_p // tk)

    in_specs = [
        pl.BlockSpec((tb, tk), lambda i, j, k: (i, k)),
        pl.BlockSpec((tk, tn), lambda i, j, k: (k, j)),
        pl.BlockSpec((1, tn), lambda i, j, k: (0, j)),
    ]
    args = [x, w, b]
    if res is not None:
        in_specs.append(pl.BlockSpec((tb, tn), lambda i, j, k: (i, j)))
        args.append(res)

    kernel = functools.partial(_layer_kernel, act=act, has_res=res is not None,
                               mxu_dtype=mxu_dtype)
    return pl.pallas_call(
        kernel,
        out_shape=jax.ShapeDtypeStruct((B, dout_p), x.dtype),
        grid=grid,
        in_specs=in_specs,
        out_specs=pl.BlockSpec((tb, tn), lambda i, j, k: (i, j)),
        scratch_shapes=[pltpu.VMEM((tb, tn), jnp.float32)],
        compiler_params=pltpu.CompilerParams(
            dimension_semantics=("parallel", "parallel", "arbitrary")),
    )(*args)


def _per_layer_forward(plan, flat, xp, pdims, tb, mxu_dtype):
    cur = xp
    res = None
    for li, (act, save_res, add_res) in enumerate(plan):
        w, b = flat[li]
        wp = _pad2(w, pdims[li], pdims[li + 1]).astype(mxu_dtype)
        bp = jnp.pad(b, (0, pdims[li + 1] - b.shape[0])).reshape(1, pdims[li + 1]) \
                .astype(jnp.float32)
        if save_res:
            res = cur
        cur = _layer_call(cur, wp, bp, res if add_res else None, act, tb, mxu_dtype)
    return cur


# ----------------------------------------------------------------------------
# Public forward
# ----------------------------------------------------------------------------
def encoder_forward(params, x, *, tb=None, mxu_dtype=jnp.bfloat16, force_per_layer=False):
    # TODO(synk): nn.Dropout is implemented as identity (inference/eval semantics).
    plan, flat = _build_layer_plan(params)

    B, d_in = x.shape
    dims = [flat[0][0].shape[0]] + [w.shape[1] for (w, _) in flat]
    assert d_in == dims[0]
    latent_dim = dims[-1]
    pdims = [_round_up(d, 128) for d in dims]    # lane-dense feature dims

    if tb is None:
        tb = _pick_tb(B)

    # Only the feature axis is padded host-side; the batch tail is handled by
    # partial last grid tiles (masked output stores), avoiding an extra HBM
    # read+write of the whole input.
    xp = x if d_in == pdims[0] else jnp.pad(x, ((0, 0), (0, pdims[0] - d_in)))

    mxu_dtype = jnp.dtype(mxu_dtype)
    n_lin = len(flat)
    weight_bytes = sum(pdims[i] * pdims[i + 1] for i in range(n_lin)) * mxu_dtype.itemsize
    bias_bytes = sum(pdims[i + 1] for i in range(n_lin)) * 4
    io_bytes = 2 * tb * (pdims[0] + pdims[-1]) * x.dtype.itemsize
    act_bytes = 4 * tb * max(pdims) * 4
    fused_vmem_worst = 2 * weight_bytes + 2 * bias_bytes + io_bytes + act_bytes
    vmem_cap = _vmem_capacity_bytes()

    use_fused = (not force_per_layer) and (fused_vmem_worst <= vmem_cap // 3)

    if not use_fused:
        # Large-i_dim / VMEM-constrained fallback: stream weights per layer.
        out = _per_layer_forward(plan, flat, xp, pdims, tb, mxu_dtype)
        return out[:, :latent_dim]

    # Zero-pad every weight / bias to (8,128)-aligned, lane-dense blocks.
    padded_params = []
    for li, (w, b) in enumerate(flat):
        wp = _pad2(w, pdims[li], pdims[li + 1]).astype(mxu_dtype)
        bp = jnp.pad(b, (0, pdims[li + 1] - b.shape[0])).reshape(1, pdims[li + 1]) \
                .astype(jnp.float32)
        padded_params.extend([wp, bp])

    flops = 2 * B * sum(pdims[i] * pdims[i + 1] for i in range(n_lin))
    transcendentals = sum(B * pdims[li + 1] for li, (act, _, _) in enumerate(plan)
                          if act in _TRANSCENDENTAL_ACTS)
    bytes_accessed = (B * pdims[0] * x.dtype.itemsize + weight_bytes + bias_bytes
                      + B * pdims[-1] * x.dtype.itemsize)
    cost = pl.CostEstimate(flops=int(flops), transcendentals=int(transcendentals),
                           bytes_accessed=int(bytes_accessed))

    vmem_limit = None
    if fused_vmem_worst > (24 << 20):
        vmem_limit = int(min(vmem_cap - (4 << 20), fused_vmem_worst + (8 << 20)))

    def run(single_buffer_weights):
        return _fused_call(plan, padded_params, xp, pdims, tb, x.dtype, mxu_dtype,
                           single_buffer_weights, vmem_limit, cost)

    try:
        out = run(True)                 # single-buffered constant weight blocks
    except Exception:
        out = run(False)                # jax without BlockSpec pipeline_mode support

    return out[:, :latent_dim]


# ----------------------------------------------------------------------------
# Pure-JAX reference (for correctness check)
# ----------------------------------------------------------------------------
def _reference_forward(params, x):
    nlin = params["nlin"]
    for lins in params["res_blocks"]:
        x_inp = x
        for (w, b) in lins[:-1]:
            x = _apply_act(x @ w + b, nlin)
        w, b = lins[-1]
        out_act = "sigmoid" if nlin == "sigmoid" else "relu"
        x = _apply_act((x @ w + b) + x_inp, out_act)
    enc = params["enc"]
    for (w, b) in enc[:-1]:
        x = _apply_act(x @ w + b, nlin)
    w, b = enc[-1]
    x = x @ w + b
    if params["normalize_latent"]:
        x = jnp.tanh(x)
    return x


# ----------------------------------------------------------------------------
# Encoder parameter construction (deterministic, mirrors Encoder.__init__)
# ----------------------------------------------------------------------------
def build_encoder_params(key, config):
    res_blocks = config.get("model::res_blocks", 0)
    res_block_lays = config.get("model::res_block_lays", 0)
    h_layers = config.get("model::h_layers", 1)
    i_dim = config.get("model::i_dim", 14 * 14 * 10 + 10 * 10)
    latent_dim = config.get("model::latent_dim", 10)
    transition = config.get("model::transition", "lin")
    nlin = config.get("model::nlin", "leakyrelu")
    init_type = config.get("model::init_type", "uniform")
    normalize_latent = config.get("model::normalize_latent", True)
    if transition != "lin":
        raise NotImplementedError

    def make_lin(key, din, dout):
        kw, key = jax.random.split(key)
        if init_type == "uniform":           # nn.init.uniform -> U(0, 1)
            w = jax.random.uniform(kw, (din, dout), jnp.float32)
        elif init_type == "normal":          # nn.init.normal -> N(0, 1)
            w = jax.random.normal(kw, (din, dout), jnp.float32)
        else:                                # kaiming-uniform-ish fallback
            bound = float(np.sqrt(6.0 / din))
            w = jax.random.uniform(kw, (din, dout), jnp.float32, -bound, bound)
        b = jnp.full((dout,), 0.01, jnp.float32)   # m.bias.data.fill_(0.01)
        return (w, b), key

    params = {"res_blocks": [], "enc": []}
    params["res"] = res_blocks > 0 and res_block_lays > 0
    params["nlin"] = nlin
    params["normalize_latent"] = normalize_latent

    if params["res"]:
        for _ in range(res_blocks):
            lins = []
            for _ in range(res_block_lays):      # (nlayers-1) hidden + 1 final linear
                lin, key = make_lin(key, i_dim, i_dim)
                lins.append(lin)
            params["res_blocks"].append(lins)

    dims = np.linspace(i_dim, latent_dim, h_layers + 2).astype("int")
    for idx in range(len(dims) - 1):
        lin, key = make_lin(key, int(dims[idx]), int(dims[idx + 1]))
        params["enc"].append(lin)
    params["dims"] = dims
    return params


# ----------------------------------------------------------------------------
if __name__ == "__main__":
    config = {
        "model::res_blocks": 1,
        "model::res_block_lays": 2,
        "model::h_layers": 1,
        "model::i_dim": 256,
        "model::latent_dim": 16,
        "model::transition": "lin",
        "model::nlin": "leakyrelu",
        "model::dropout": 0.2,
        "model::init_type": "kaiming_uniform",   # keeps activations O(1) -> meaningful check
        "model::normalize_latent": True,
    }

    key = jax.random.PRNGKey(0)
    kparams, kx, kx2 = jax.random.split(key, 3)
    params = build_encoder_params(kparams, config)

    B = 8
    x = jax.random.normal(kx, (B, config["model::i_dim"]), jnp.float32)
    ref = jax.block_until_ready(_reference_forward(params, x))

    # Default path: fused single pallas_call, bf16 MXU inputs, f32 accumulation.
    out = jax.block_until_ready(encoder_forward(params, x))
    assert out.shape == (B, config["model::latent_dim"])
    assert bool(jnp.all(jnp.isfinite(out)))
    assert bool(jnp.all(jnp.abs(out) <= 1.0))      # tanh-normalized latent
    np.testing.assert_allclose(np.asarray(out), np.asarray(ref), rtol=1e-1, atol=1e-1)

    # VMEM-constrained fallback path (per-layer K/N-tiled), exercised in f32.
    out_pl = jax.block_until_ready(
        encoder_forward(params, x, force_per_layer=True, mxu_dtype=jnp.float32))
    np.testing.assert_allclose(np.asarray(out_pl), np.asarray(ref), rtol=1e-1, atol=1e-1)

    # Larger batch: >=2 grid steps (megacore) and a partial tail tile
    # (no host-side batch padding copy).
    B2 = 40
    x2 = jax.random.normal(kx2, (B2, config["model::i_dim"]), jnp.float32)
    ref2 = jax.block_until_ready(_reference_forward(params, x2))
    out2 = jax.block_until_ready(encoder_forward(params, x2))
    assert out2.shape == (B2, config["model::latent_dim"])
    assert bool(jnp.all(jnp.isfinite(out2)))
    np.testing.assert_allclose(np.asarray(out2), np.asarray(ref2), rtol=1e-1, atol=1e-1)

    print("KERNEL_OK")
</pallas_src>

<mosaic_0001>
module attributes {stable_mosaic.version = 11 : i64} {
  func.func @kernel(%arg0: i32, %arg1: memref<8x256xf32, #tpu.memory_space<vmem>>, %arg2: memref<256x256xbf16, #tpu.memory_space<vmem>>, %arg3: memref<1x256xf32, #tpu.memory_space<vmem>>, %arg4: memref<256x256xbf16, #tpu.memory_space<vmem>>, %arg5: memref<1x256xf32, #tpu.memory_space<vmem>>, %arg6: memref<256x256xbf16, #tpu.memory_space<vmem>>, %arg7: memref<1x256xf32, #tpu.memory_space<vmem>>, %arg8: memref<256x128xbf16, #tpu.memory_space<vmem>>, %arg9: memref<1x128xf32, #tpu.memory_space<vmem>>, %arg10: memref<8x128xf32, #tpu.memory_space<vmem>>) attributes {dimension_semantics = [#tpu.dimension_semantics<parallel>], iteration_bounds = array<i64: 1>, scalar_prefetch = 0 : i64, scratch_operands = 0 : i64, tpu.core_type = #tpu.core_type<tc>, window_params = [{transform_indices = @transform_0, window_bounds = array<i64: 8, 256>}, {pipeline_mode = #tpu.pipeline_mode<synchronous>, transform_indices = @transform_1, window_bounds = array<i64: 256, 256>}, {pipeline_mode = #tpu.pipeline_mode<synchronous>, transform_indices = @transform_2, window_bounds = array<i64: 1, 256>}, {pipeline_mode = #tpu.pipeline_mode<synchronous>, transform_indices = @transform_3, window_bounds = array<i64: 256, 256>}, {pipeline_mode = #tpu.pipeline_mode<synchronous>, transform_indices = @transform_4, window_bounds = array<i64: 1, 256>}, {pipeline_mode = #tpu.pipeline_mode<synchronous>, transform_indices = @transform_5, window_bounds = array<i64: 256, 256>}, {pipeline_mode = #tpu.pipeline_mode<synchronous>, transform_indices = @transform_6, window_bounds = array<i64: 1, 256>}, {pipeline_mode = #tpu.pipeline_mode<synchronous>, transform_indices = @transform_7, window_bounds = array<i64: 256, 128>}, {pipeline_mode = #tpu.pipeline_mode<synchronous>, transform_indices = @transform_8, window_bounds = array<i64: 1, 128>}, {transform_indices = @transform_9, window_bounds = array<i64: 8, 128>}]} {
    %c0 = arith.constant 0 : index
    %c0_0 = arith.constant 0 : index
    %0 = vector.load %arg1[%c0, %c0_0] : memref<8x256xf32, #tpu.memory_space<vmem>>, vector<8x256xf32>
    %c0_1 = arith.constant 0 : index
    %c0_2 = arith.constant 0 : index
    %1 = vector.load %arg2[%c0_1, %c0_2] : memref<256x256xbf16, #tpu.memory_space<vmem>>, vector<256x256xbf16>
    %c0_3 = arith.constant 0 : index
    %c0_4 = arith.constant 0 : index
    %2 = vector.load %arg3[%c0_3, %c0_4] : memref<1x256xf32, #tpu.memory_space<vmem>>, vector<1x256xf32>
    %3 = arith.truncf %0 : vector<8x256xf32> to vector<8x256xbf16>
    %cst = arith.constant dense<0.000000e+00> : vector<8x256xf32>
    %4 = tpu.matmul %3, %1, %cst {dimension_numbers = #tpu.dot_dimension_numbers<[1], [0], [0], [1], [0, 0, 1, 1], [], []>} : vector<8x256xbf16>, vector<256x256xbf16>, vector<8x256xf32> -> vector<8x256xf32>
    %5 = vector.broadcast %2 : vector<1x256xf32> to vector<8x256xf32>
    %6 = arith.addf %4, %5 : vector<8x256xf32>
    %cst_5 = arith.constant 0.000000e+00 : f32
    %7 = vector.broadcast %cst_5 : f32 to vector<8x256xf32>
    %8 = arith.cmpf ogt, %6, %7 : vector<8x256xf32>
    %cst_6 = arith.constant 0.00999999977 : f32
    %9 = vector.broadcast %cst_6 : f32 to vector<8x256xf32>
    %10 = arith.mulf %9, %6 : vector<8x256xf32>
    %11 = arith.select %8, %6, %10 : vector<8x256xi1>, vector<8x256xf32>
    %c0_7 = arith.constant 0 : index
    %c0_8 = arith.constant 0 : index
    %12 = vector.load %arg4[%c0_7, %c0_8] : memref<256x256xbf16, #tpu.memory_space<vmem>>, vector<256x256xbf16>
    %c0_9 = arith.constant 0 : index
    %c0_10 = arith.constant 0 : index
    %13 = vector.load %arg5[%c0_9, %c0_10] : memref<1x256xf32, #tpu.memory_space<vmem>>, vector<1x256xf32>
    %14 = arith.truncf %11 : vector<8x256xf32> to vector<8x256xbf16>
    %cst_11 = arith.constant dense<0.000000e+00> : vector<8x256xf32>
    %15 = tpu.matmul %14, %12, %cst_11 {dimension_numbers = #tpu.dot_dimension_numbers<[1], [0], [0], [1], [0, 0, 1, 1], [], []>} : vector<8x256xbf16>, vector<256x256xbf16>, vector<8x256xf32> -> vector<8x256xf32>
    %16 = vector.broadcast %13 : vector<1x256xf32> to vector<8x256xf32>
    %17 = arith.addf %15, %16 : vector<8x256xf32>
    %18 = arith.addf %17, %0 : vector<8x256xf32>
    %cst_12 = arith.constant 0.000000e+00 : f32
    %19 = vector.broadcast %cst_12 : f32 to vector<8x256xf32>
    %20 = arith.maximumf %18, %19 : vector<8x256xf32>
    %c0_13 = arith.constant 0 : index
    %c0_14 = arith.constant 0 : index
    %21 = vector.load %arg6[%c0_13, %c0_14] : memref<256x256xbf16, #tpu.memory_space<vmem>>, vector<256x256xbf16>
    %c0_15 = arith.constant 0 : index
    %c0_16 = arith.constant 0 : index
    %22 = vector.load %arg7[%c0_15, %c0_16] : memref<1x256xf32, #tpu.memory_space<vmem>>, vector<1x256xf32>
    %23 = arith.truncf %20 : vector<8x256xf32> to vector<8x256xbf16>
    %cst_17 = arith.constant dense<0.000000e+00> : vector<8x256xf32>
    %24 = tpu.matmul %23, %21, %cst_17 {dimension_numbers = #tpu.dot_dimension_numbers<[1], [0], [0], [1], [0, 0, 1, 1], [], []>} : vector<8x256xbf16>, vector<256x256xbf16>, vector<8x256xf32> -> vector<8x256xf32>
    %25 = vector.broadcast %22 : vector<1x256xf32> to vector<8x256xf32>
    %26 = arith.addf %24, %25 : vector<8x256xf32>
    %cst_18 = arith.constant 0.000000e+00 : f32
    %27 = vector.broadcast %cst_18 : f32 to vector<8x256xf32>
    %28 = arith.cmpf ogt, %26, %27 : vector<8x256xf32>
    %cst_19 = arith.constant 0.00999999977 : f32
    %29 = vector.broadcast %cst_19 : f32 to vector<8x256xf32>
    %30 = arith.mulf %29, %26 : vector<8x256xf32>
    %31 = arith.select %28, %26, %30 : vector<8x256xi1>, vector<8x256xf32>
    %c0_20 = arith.constant 0 : index
    %c0_21 = arith.constant 0 : index
    %32 = vector.load %arg8[%c0_20, %c0_21] : memref<256x128xbf16, #tpu.memory_space<vmem>>, vector<256x128xbf16>
    %c0_22 = arith.constant 0 : index
    %c0_23 = arith.constant 0 : index
    %33 = vector.load %arg9[%c0_22, %c0_23] : memref<1x128xf32, #tpu.memory_space<vmem>>, vector<1x128xf32>
    %34 = arith.truncf %31 : vector<8x256xf32> to vector<8x256xbf16>
    %cst_24 = arith.constant dense<0.000000e+00> : vector<8x128xf32>
    %35 = tpu.matmul %34, %32, %cst_24 {dimension_numbers = #tpu.dot_dimension_numbers<[1], [0], [0], [1], [0, 0, 1, 1], [], []>} : vector<8x256xbf16>, vector<256x128xbf16>, vector<8x128xf32> -> vector<8x128xf32>
    %36 = vector.broadcast %33 : vector<1x128xf32> to vector<8x128xf32>
    %37 = arith.addf %35, %36 : vector<8x128xf32>
    %38 = math.tanh %37 : vector<8x128xf32>
    %c0_25 = arith.constant 0 : index
    %c0_26 = arith.constant 0 : index
    %39 = vector.load %arg10[%c0_25, %c0_26] : memref<8x128xf32, #tpu.memory_space<vmem>>, vector<8x128xf32>
    tpu.vector_store %arg10[%c0_25, %c0_26], %38 {strides = array<i32>} : memref<8x128xf32, #tpu.memory_space<vmem>>, vector<8x128xf32>,
    return
  }
  func.func @transform_0(%arg0: i32) -> (i32, i32) {
    %c0_i32 = arith.constant 0 : i32
    %c0_i32_0 = arith.constant 0 : i32
    return %arg0, %c0_i32 : i32, i32
  }
  func.func @transform_1(%arg0: i32) -> (i32, i32) {
    %c0_i32 = arith.constant 0 : i32
    %c0_i32_0 = arith.constant 0 : i32
    %c0_i32_1 = arith.constant 0 : i32
    return %c0_i32, %c0_i32_0 : i32, i32
  }
  func.func @transform_2(%arg0: i32) -> (i32, i32) {
    %c0_i32 = arith.constant 0 : i32
    %c0_i32_0 = arith.constant 0 : i32
    %c0_i32_1 = arith.constant 0 : i32
    return %c0_i32, %c0_i32_0 : i32, i32
  }
  func.func @transform_3(%arg0: i32) -> (i32, i32) {
    %c0_i32 = arith.constant 0 : i32
    %c0_i32_0 = arith.constant 0 : i32
    %c0_i32_1 = arith.constant 0 : i32
    return %c0_i32, %c0_i32_0 : i32, i32
  }
  func.func @transform_4(%arg0: i32) -> (i32, i32) {
    %c0_i32 = arith.constant 0 : i32
    %c0_i32_0 = arith.constant 0 : i32
    %c0_i32_1 = arith.constant 0 : i32
    return %c0_i32, %c0_i32_0 : i32, i32
  }
  func.func @transform_5(%arg0: i32) -> (i32, i32) {
    %c0_i32 = arith.constant 0 : i32
    %c0_i32_0 = arith.constant 0 : i32
    %c0_i32_1 = arith.constant 0 : i32
    return %c0_i32, %c0_i32_0 : i32, i32
  }
  func.func @transform_6(%arg0: i32) -> (i32, i32) {
    %c0_i32 = arith.constant 0 : i32
    %c0_i32_0 = arith.constant 0 : i32
    %c0_i32_1 = arith.constant 0 : i32
    return %c0_i32, %c0_i32_0 : i32, i32
  }
  func.func @transform_7(%arg0: i32) -> (i32, i32) {
    %c0_i32 = arith.constant 0 : i32
    %c0_i32_0 = arith.constant 0 : i32
    %c0_i32_1 = arith.constant 0 : i32
    return %c0_i32, %c0_i32_0 : i32, i32
  }
  func.func @transform_8(%arg0: i32) -> (i32, i32) {
    %c0_i32 = arith.constant 0 : i32
    %c0_i32_0 = arith.constant 0 : i32
    %c0_i32_1 = arith.constant 0 : i32
    return %c0_i32, %c0_i32_0 : i32, i32
  }
  func.func @transform_9(%arg0: i32) -> (i32, i32) {
    %c0_i32 = arith.constant 0 : i32
    %c0_i32_0 = arith.constant 0 : i32
    return %arg0, %c0_i32 : i32, i32
  }
}

module attributes {stable_mosaic.version = 11 : i64} {
  func.func @kernel(%arg0: i32, %arg1: memref<8x256xf32, #tpu.memory_space<vmem>>, %arg2: memref<256x256xbf16, #tpu.memory_space<vmem>>, %arg3: memref<1x256xf32, #tpu.memory_space<vmem>>, %arg4: memref<256x256xbf16, #tpu.memory_space<vmem>>, %arg5: memref<1x256xf32, #tpu.memory_space<vmem>>, %arg6: memref<256x256xbf16, #tpu.memory_space<vmem>>, %arg7: memref<1x256xf32, #tpu.memory_space<vmem>>, %arg8: memref<256x128xbf16, #tpu.memory_space<vmem>>, %arg9: memref<1x128xf32, #tpu.memory_space<vmem>>, %arg10: memref<8x128xf32, #tpu.memory_space<vmem>>) attributes {dimension_semantics = [#tpu.dimension_semantics<parallel>], iteration_bounds = array<i64: 1>, scalar_prefetch = 0 : i64, scratch_operands = 0 : i64, tpu.core_type = #tpu.core_type<tc>, window_params = [{transform_indices = @transform_0, window_bounds = array<i64: 8, 256>}, {pipeline_mode = #tpu.pipeline_mode<synchronous>, transform_indices = @transform_1, window_bounds = array<i64: 256, 256>}, {pipeline_mode = #tpu.pipeline_mode<synchronous>, transform_indices = @transform_2, window_bounds = array<i64: 1, 256>}, {pipeline_mode = #tpu.pipeline_mode<synchronous>, transform_indices = @transform_3, window_bounds = array<i64: 256, 256>}, {pipeline_mode = #tpu.pipeline_mode<synchronous>, transform_indices = @transform_4, window_bounds = array<i64: 1, 256>}, {pipeline_mode = #tpu.pipeline_mode<synchronous>, transform_indices = @transform_5, window_bounds = array<i64: 256, 256>}, {pipeline_mode = #tpu.pipeline_mode<synchronous>, transform_indices = @transform_6, window_bounds = array<i64: 1, 256>}, {pipeline_mode = #tpu.pipeline_mode<synchronous>, transform_indices = @transform_7, window_bounds = array<i64: 256, 128>}, {pipeline_mode = #tpu.pipeline_mode<synchronous>, transform_indices = @transform_8, window_bounds = array<i64: 1, 128>}, {transform_indices = @transform_9, window_bounds = array<i64: 8, 128>}]} {
    %c0 = arith.constant 0 : index
    %c0_0 = arith.constant 0 : index
    %0 = vector.load %arg1[%c0, %c0_0] : memref<8x256xf32, #tpu.memory_space<vmem>>, vector<8x256xf32>
    %c0_1 = arith.constant 0 : index
    %c0_2 = arith.constant 0 : index
    %1 = vector.load %arg2[%c0_1, %c0_2] : memref<256x256xbf16, #tpu.memory_space<vmem>>, vector<256x256xbf16>
    %c0_3 = arith.constant 0 : index
    %c0_4 = arith.constant 0 : index
    %2 = vector.load %arg3[%c0_3, %c0_4] : memref<1x256xf32, #tpu.memory_space<vmem>>, vector<1x256xf32>
    %3 = arith.truncf %0 : vector<8x256xf32> to vector<8x256xbf16>
    %cst = arith.constant dense<0.000000e+00> : vector<8x256xf32>
    %4 = tpu.matmul %3, %1, %cst {dimension_numbers = #tpu.dot_dimension_numbers<[1], [0], [0], [1], [0, 0, 1, 1], [], []>} : vector<8x256xbf16>, vector<256x256xbf16>, vector<8x256xf32> -> vector<8x256xf32>
    %5 = vector.broadcast %2 : vector<1x256xf32> to vector<8x256xf32>
    %6 = arith.addf %4, %5 : vector<8x256xf32>
    %cst_5 = arith.constant 0.000000e+00 : f32
    %7 = vector.broadcast %cst_5 : f32 to vector<8x256xf32>
    %8 = arith.cmpf ogt, %6, %7 : vector<8x256xf32>
    %cst_6 = arith.constant 0.00999999977 : f32
    %9 = vector.broadcast %cst_6 : f32 to vector<8x256xf32>
    %10 = arith.mulf %9, %6 : vector<8x256xf32>
    %11 = arith.select %8, %6, %10 : vector<8x256xi1>, vector<8x256xf32>
    %c0_7 = arith.constant 0 : index
    %c0_8 = arith.constant 0 : index
    %12 = vector.load %arg4[%c0_7, %c0_8] : memref<256x256xbf16, #tpu.memory_space<vmem>>, vector<256x256xbf16>
    %c0_9 = arith.constant 0 : index
    %c0_10 = arith.constant 0 : index
    %13 = vector.load %arg5[%c0_9, %c0_10] : memref<1x256xf32, #tpu.memory_space<vmem>>, vector<1x256xf32>
    %14 = arith.truncf %11 : vector<8x256xf32> to vector<8x256xbf16>
    %cst_11 = arith.constant dense<0.000000e+00> : vector<8x256xf32>
    %15 = tpu.matmul %14, %12, %cst_11 {dimension_numbers = #tpu.dot_dimension_numbers<[1], [0], [0], [1], [0, 0, 1, 1], [], []>} : vector<8x256xbf16>, vector<256x256xbf16>, vector<8x256xf32> -> vector<8x256xf32>
    %16 = vector.broadcast %13 : vector<1x256xf32> to vector<8x256xf32>
    %17 = arith.addf %15, %16 : vector<8x256xf32>
    %18 = arith.addf %17, %0 : vector<8x256xf32>
    %cst_12 = arith.constant 0.000000e+00 : f32
    %19 = vector.broadcast %cst_12 : f32 to vector<8x256xf32>
    %20 = arith.maximumf %18, %19 : vector<8x256xf32>
    %c0_13 = arith.constant 0 : index
    %c0_14 = arith.constant 0 : index
    %21 = vector.load %arg6[%c0_13, %c0_14] : memref<256x256xbf16, #tpu.memory_space<vmem>>, vector<256x256xbf16>
    %c0_15 = arith.constant 0 : index
    %c0_16 = arith.constant 0 : index
    %22 = vector.load %arg7[%c0_15, %c0_16] : memref<1x256xf32, #tpu.memory_space<vmem>>, vector<1x256xf32>
    %23 = arith.truncf %20 : vector<8x256xf32> to vector<8x256xbf16>
    %cst_17 = arith.constant dense<0.000000e+00> : vector<8x256xf32>
    %24 = tpu.matmul %23, %21, %cst_17 {dimension_numbers = #tpu.dot_dimension_numbers<[1], [0], [0], [1], [0, 0, 1, 1], [], []>} : vector<8x256xbf16>, vector<256x256xbf16>, vector<8x256xf32> -> vector<8x256xf32>
    %25 = vector.broadcast %22 : vector<1x256xf32> to vector<8x256xf32>
    %26 = arith.addf %24, %25 : vector<8x256xf32>
    %cst_18 = arith.constant 0.000000e+00 : f32
    %27 = vector.broadcast %cst_18 : f32 to vector<8x256xf32>
    %28 = arith.cmpf ogt, %26, %27 : vector<8x256xf32>
    %cst_19 = arith.constant 0.00999999977 : f32
    %29 = vector.broadcast %cst_19 : f32 to vector<8x256xf32>
    %30 = arith.mulf %29, %26 : vector<8x256xf32>
    %31 = arith.select %28, %26, %30 : vector<8x256xi1>, vector<8x256xf32>
    %c0_20 = arith.constant 0 : index
    %c0_21 = arith.constant 0 : index
    %32 = vector.load %arg8[%c0_20, %c0_21] : memref<256x128xbf16, #tpu.memory_space<vmem>>, vector<256x128xbf16>
    %c0_22 = arith.constant 0 : index
    %c0_23 = arith.constant 0 : index
    %33 = vector.load %arg9[%c0_22, %c0_23] : memref<1x128xf32, #tpu.memory_space<vmem>>, vector<1x128xf32>
    %34 = arith.truncf %31 : vector<8x256xf32> to vector<8x256xbf16>
    %cst_24 = arith.constant dense<0.000000e+00> : vector<8x128xf32>
    %35 = tpu.matmul %34, %32, %cst_24 {dimension_numbers = #tpu.dot_dimension_numbers<[1], [0], [0], [1], [0, 0, 1, 1], [], []>} : vector<8x256xbf16>, vector<256x128xbf16>, vector<8x128xf32> -> vector<8x128xf32>
    %36 = vector.broadcast %33 : vector<1x128xf32> to vector<8x128xf32>
    %37 = arith.addf %35, %36 : vector<8x128xf32>
    %38 = math.tanh %37 : vector<8x128xf32>
    %c0_25 = arith.constant 0 : index
    %c0_26 = arith.constant 0 : index
    %39 = vector.load %arg10[%c0_25, %c0_26] : memref<8x128xf32, #tpu.memory_space<vmem>>, vector<8x128xf32>
    tpu.vector_store %arg10[%c0_25, %c0_26], %38 {strides = array<i32>} : memref<8x128xf32, #tpu.memory_space<vmem>>, vector<8x128xf32>,
    return
  }
  func.func @transform_0(%arg0: i32) -> (i32, i32) {
    %c0_i32 = arith.constant 0 : i32
    %c0_i32_0 = arith.constant 0 : i32
    return %arg0, %c0_i32 : i32, i32
  }
  func.func @transform_1(%arg0: i32) -> (i32, i32) {
    %c0_i32 = arith.constant 0 : i32
    %c0_i32_0 = arith.constant 0 : i32
    %c0_i32_1 = arith.constant 0 : i32
    return %c0_i32, %c0_i32_0 : i32, i32
  }
  func.func @transform_2(%arg0: i32) -> (i32, i32) {
    %c0_i32 = arith.constant 0 : i32
    %c0_i32_0 = arith.constant 0 : i32
    %c0_i32_1 = arith.constant 0 : i32
    return %c0_i32, %c0_i32_0 : i32, i32
  }
  func.func @transform_3(%arg0: i32) -> (i32, i32) {
    %c0_i32 = arith.constant 0 : i32
    %c0_i32_0 = arith.constant 0 : i32
    %c0_i32_1 = arith.constant 0 : i32
    return %c0_i32, %c0_i32_0 : i32, i32
  }
  func.func @transform_4(%arg0: i32) -> (i32, i32) {
    %c0_i32 = arith.constant 0 : i32
    %c0_i32_0 = arith.constant 0 : i32
    %c0_i32_1 = arith.constant 0 : i32
    return %c0_i32, %c0_i32_0 : i32, i32
  }
  func.func @transform_5(%arg0: i32) -> (i32, i32) {
    %c0_i32 = arith.constant 0 : i32
    %c0_i32_0 = arith.constant 0 : i32
    %c0_i32_1 = arith.constant 0 : i32
    return %c0_i32, %c0_i32_0 : i32, i32
  }
  func.func @transform_6(%arg0: i32) -> (i32, i32) {
    %c0_i32 = arith.constant 0 : i32
    %c0_i32_0 = arith.constant 0 : i32
    %c0_i32_1 = arith.constant 0 : i32
    return %c0_i32, %c0_i32_0 : i32, i32
  }
  func.func @transform_7(%arg0: i32) -> (i32, i32) {
    %c0_i32 = arith.constant 0 : i32
    %c0_i32_0 = arith.constant 0 : i32
    %c0_i32_1 = arith.constant 0 : i32
    return %c0_i32, %c0_i32_0 : i32, i32
  }
  func.func @transform_8(%arg0: i32) -> (i32, i32) {
    %c0_i32 = arith.constant 0 : i32
    %c0_i32_0 = arith.constant 0 : i32
    %c0_i32_1 = arith.constant 0 : i32
    return %c0_i32, %c0_i32_0 : i32, i32
  }
  func.func @transform_9(%arg0: i32) -> (i32, i32) {
    %c0_i32 = arith.constant 0 : i32
    %c0_i32_0 = arith.constant 0 : i32
    return %arg0, %c0_i32 : i32, i32
  }
}

</mosaic_0001>

<llo_original>
// kernel: tpu_custom_call.1
$region0: #{tpu_custom_call.1}
  #allocation0 [shape = 'u32[]', space=smem, size = 0x4, offset = 0x4, fixed_abs, tag = 'smem constant byte address 0x4 - core index']
  #allocation1 [shape = 'u32[144,128]{1,0:T(1,128)}', space=vmem, size = 0x12000, scoped, tag = 'internal scratch']
  %s0 = inlined_call_operand.hbm [shape: f32[8,256], index: 0, kind: input, shape index: {}]
  %s1 = inlined_call_operand.hbm [shape: bf16[256,256], index: 1, kind: input, shape index: {}]
  %s2 = inlined_call_operand.vmem [shape: f32[1,256], index: 2, kind: input, shape index: {}]
  %s3 = inlined_call_operand.hbm [shape: bf16[256,256], index: 3, kind: input, shape index: {}]
  %s4 = inlined_call_operand.vmem [shape: f32[1,256], index: 4, kind: input, shape index: {}]
  %s5 = inlined_call_operand.hbm [shape: bf16[256,256], index: 5, kind: input, shape index: {}]
  %s6 = inlined_call_operand.vmem [shape: f32[1,256], index: 6, kind: input, shape index: {}]
  %s7 = inlined_call_operand.hbm [shape: bf16[256,128], index: 7, kind: input, shape index: {}]
  %s8 = inlined_call_operand.vmem [shape: f32[1,128], index: 8, kind: input, shape index: {}]
  %s9 = inlined_call_operand.hbm [shape: f32[8,128], index: 9, kind: output, shape index: {}]
  %s10 = sld [smem:[#allocation0]]
  $region66: #{tpu_custom_call.1} parent=0
    _
  %s12 = ssub.s32 1, %s10
  %s13 = scalar_select 0, %s12, %s10
  $region1: #{tpu_custom_call.1} parent=0
    #allocation2 [shape = 'u8[8192]{0}', space=vmem, size = 0x2000, scoped, tag = 'input window, operand 0, single buffered']
    #allocation3 [shape = 's32[1]{0}', space=sflag, size = 0x4, scoped, tag = 'scoped memory for tpu_custom_call.1']
    #allocation4 [shape = 's32[1]{0}', space=sflag, size = 0x4, scoped, tag = 'scoped memory for tpu_custom_call.1']
    #allocation5 [shape = 'u8[131072]{0}', space=vmem, size = 0x20000, scoped, tag = 'input window, operand 1, single buffered']
    #allocation6 [shape = 's32[1]{0}', space=sflag, size = 0x4, scoped, tag = 'scoped memory for tpu_custom_call.1']
    #allocation7 [shape = 'u8[131072]{0}', space=vmem, size = 0x20000, scoped, tag = 'input window, operand 3, single buffered']
    #allocation8 [shape = 'u8[131072]{0}', space=vmem, size = 0x20000, scoped, tag = 'input window, operand 5, single buffered']
    #allocation9 [shape = 's32[1]{0}', space=sflag, size = 0x4, scoped, tag = 'scoped memory for tpu_custom_call.1']
    #allocation10 [shape = 'u8[65536]{0}', space=vmem, size = 0x10000, scoped, tag = 'input window, operand 7, single buffered']
    #allocation11 [shape = 'u8[4096]{0}', space=vmem, size = 0x1000, scoped, tag = 'output window, operand 0, single buffered']
    %14 = vsyncpa [#allocation3], 0
    %15 = vsyncpa [#allocation6], 0
    %16 = vsyncpa [#allocation9], 0
    %17 = vsyncpa [#allocation4], 0
    // Predicated region
    $region2: #{tpu_custom_call.1} parent=1 // pred_check
      _
    $region3: #{tpu_custom_call.1} parent=1 // pred_check_branch
      %19 = sbr.rel (0) target = $region5
    $region4: #{tpu_custom_call.1} parent=1 // pred_region
      %s21 = ssub.s32 256, 256
      %22 = vsyncadd [#allocation3], %s21
      %s24 = sshll.u32 [#allocation2], 4
      %s25 = int_to_ptr.vmem [resolvable:$true] %s24
      %27 = dma.hbm_to_vmem [thread:$0]  %s0, 256, %s25, [#allocation3]
    $region5: #{tpu_custom_call.1} parent=1 // pred_fallthru
      _
    // Predicated region
    $region6: #{tpu_custom_call.1} parent=1 // pred_check
      _
    $region7: #{tpu_custom_call.1} parent=1 // pred_check_branch
      %29 = sbr.rel (0) target = $region9
    $region8: #{tpu_custom_call.1} parent=1 // pred_region
      %s31 = ssub.s32 4096, 4096
      %32 = vsyncadd [#allocation6], %s31
      %s33 = sshll.u32 [#allocation5], 4
      %s34 = int_to_ptr.vmem [resolvable:$true] %s33
      %39 = dma.hbm_to_vmem [thread:$0]  %s1, 4096, %s34, [#allocation6], 128, 128, 8
    $region9: #{tpu_custom_call.1} parent=1 // pred_fallthru
      _
    // Predicated region
    $region10: #{tpu_custom_call.1} parent=1 // pred_check
      _
    $region11: #{tpu_custom_call.1} parent=1 // pred_check_branch
      %41 = sbr.rel (0) target = $region13
    $region12: #{tpu_custom_call.1} parent=1 // pred_region
      _
    $region13: #{tpu_custom_call.1} parent=1 // pred_fallthru
      _
    // Predicated region
    $region14: #{tpu_custom_call.1} parent=1 // pred_check
      _
    $region15: #{tpu_custom_call.1} parent=1 // pred_check_branch
      %43 = sbr.rel (0) target = $region17
    $region16: #{tpu_custom_call.1} parent=1 // pred_region
      %s45 = ssub.s32 4096, 4096
      %46 = vsyncadd [#allocation6], %s45
      %s47 = sshll.u32 [#allocation7], 4
      %s48 = int_to_ptr.vmem [resolvable:$true] %s47
      %53 = dma.hbm_to_vmem [thread:$0]  %s3, 4096, %s48, [#allocation6], 128, 128, 8
    $region17: #{tpu_custom_call.1} parent=1 // pred_fallthru
      _
    // Predicated region
    $region18: #{tpu_custom_call.1} parent=1 // pred_check
      _
    $region19: #{tpu_custom_call.1} parent=1 // pred_check_branch
      %55 = sbr.rel (0) target = $region21
    $region20: #{tpu_custom_call.1} parent=1 // pred_region
      _
    $region21: #{tpu_custom_call.1} parent=1 // pred_fallthru
      _
    // Predicated region
    $region22: #{tpu_custom_call.1} parent=1 // pred_check
      _
    $region23: #{tpu_custom_call.1} parent=1 // pred_check_branch
      %57 = sbr.rel (0) target = $region25
    $region24: #{tpu_custom_call.1} parent=1 // pred_region
      %s59 = ssub.s32 4096, 4096
      %60 = vsyncadd [#allocation9], %s59
      %s61 = sshll.u32 [#allocation8], 4
      %s62 = int_to_ptr.vmem [resolvable:$true] %s61
      %67 = dma.hbm_to_vmem [thread:$0]  %s5, 4096, %s62, [#allocation9], 128, 128, 8
    $region25: #{tpu_custom_call.1} parent=1 // pred_fallthru
      _
    // Predicated region
    $region26: #{tpu_custom_call.1} parent=1 // pred_check
      _
    $region27: #{tpu_custom_call.1} parent=1 // pred_check_branch
      %69 = sbr.rel (0) target = $region29
    $region28: #{tpu_custom_call.1} parent=1 // pred_region
      _
    $region29: #{tpu_custom_call.1} parent=1 // pred_fallthru
      _
    // Predicated region
    $region30: #{tpu_custom_call.1} parent=1 // pred_check
      _
    $region31: #{tpu_custom_call.1} parent=1 // pred_check_branch
      %71 = sbr.rel (0) target = $region33
    $region32: #{tpu_custom_call.1} parent=1 // pred_region
      %s73 = ssub.s32 2048, 2048
      %74 = vsyncadd [#allocation9], %s73
      %s75 = sshll.u32 [#allocation10], 4
      %s76 = int_to_ptr.vmem [resolvable:$true] %s75
      %81 = dma.hbm_to_vmem [thread:$0]  %s7, 2048, %s76, [#allocation9], 64, 64, 4
    $region33: #{tpu_custom_call.1} parent=1 // pred_fallthru
      _
    // Predicated region
    $region34: #{tpu_custom_call.1} parent=1 // pred_check
      _
    $region35: #{tpu_custom_call.1} parent=1 // pred_check_branch
      %83 = sbr.rel (0) target = $region37
    $region36: #{tpu_custom_call.1} parent=1 // pred_region
      _
    $region37: #{tpu_custom_call.1} parent=1 // pred_fallthru
      _
    // Predicated region
    $region38: #{tpu_custom_call.1} parent=1 // pred_check
      _
    $region39: #{tpu_custom_call.1} parent=1 // pred_check_branch
      %85 = sbr.rel (0) target = $region41
    $region40: #{tpu_custom_call.1} parent=1 // pred_region
      %86 = dma.done [#allocation3], 256
    $region41: #{tpu_custom_call.1} parent=1 // pred_fallthru
      _
    // Predicated region
    $region42: #{tpu_custom_call.1} parent=1 // pred_check
      _
    $region43: #{tpu_custom_call.1} parent=1 // pred_check_branch
      %88 = sbr.rel (0) target = $region45
    $region44: #{tpu_custom_call.1} parent=1 // pred_region
      %89 = dma.done [#allocation6], 4096
    $region45: #{tpu_custom_call.1} parent=1 // pred_fallthru
      _
    // Predicated region
    $region46: #{tpu_custom_call.1} parent=1 // pred_check
      _
    $region47: #{tpu_custom_call.1} parent=1 // pred_check_branch
      %91 = sbr.rel (0) target = $region49
    $region48: #{tpu_custom_call.1} parent=1 // pred_region
      %92 = dma.done [#allocation6], 4096
    $region49: #{tpu_custom_call.1} parent=1 // pred_fallthru
      _
    // Predicated region
    $region50: #{tpu_custom_call.1} parent=1 // pred_check
      _
    $region51: #{tpu_custom_call.1} parent=1 // pred_check_branch
      %94 = sbr.rel (0) target = $region53
    $region52: #{tpu_custom_call.1} parent=1 // pred_region
      %95 = dma.done [#allocation9], 4096
    $region53: #{tpu_custom_call.1} parent=1 // pred_fallthru
      _
    // Predicated region
    $region54: #{tpu_custom_call.1} parent=1 // pred_check
      _
    $region55: #{tpu_custom_call.1} parent=1 // pred_check_branch
      %97 = sbr.rel (0) target = $region57
    $region56: #{tpu_custom_call.1} parent=1 // pred_region
      %98 = dma.done [#allocation9], 2048
    $region57: #{tpu_custom_call.1} parent=1 // pred_fallthru
      _
    %v100 = vld [vmem:[#allocation2] sm:$0xff]
    %v101 = vld [vmem:[#allocation2 + $0x8] sm:$0xff]
    %v102 = vld [vmem:[#allocation5] sm:$0xff]
    %v103 = vld [vmem:[#allocation5 + $0x8] sm:$0xff]
    %v104 = vld [vmem:[#allocation5 + $0x10] sm:$0xff]
    %v105 = vld [vmem:[#allocation5 + $0x18] sm:$0xff]
    %v106 = vld [vmem:[#allocation5 + $0x20] sm:$0xff]
    %v107 = vld [vmem:[#allocation5 + $0x28] sm:$0xff]
    %v108 = vld [vmem:[#allocation5 + $0x30] sm:$0xff]
    %v109 = vld [vmem:[#allocation5 + $0x38] sm:$0xff]
    %v110 = vld [vmem:[#allocation5 + $0x40] sm:$0xff]
    %v111 = vld [vmem:[#allocation5 + $0x48] sm:$0xff]
    %v112 = vld [vmem:[#allocation5 + $0x50] sm:$0xff]
    %v113 = vld [vmem:[#allocation5 + $0x58] sm:$0xff]
    %v114 = vld [vmem:[#allocation5 + $0x60] sm:$0xff]
    %v115 = vld [vmem:[#allocation5 + $0x68] sm:$0xff]
    %v116 = vld [vmem:[#allocation5 + $0x70] sm:$0xff]
    %v117 = vld [vmem:[#allocation5 + $0x78] sm:$0xff]
    %v118 = vld [vmem:[#allocation5 + $0x80] sm:$0xff]
    %v119 = vld [vmem:[#allocation5 + $0x88] sm:$0xff]
    %v120 = vld [vmem:[#allocation5 + $0x90] sm:$0xff]
    %v121 = vld [vmem:[#allocation5 + $0x98] sm:$0xff]
    %v122 = vld [vmem:[#allocation5 + $0xa0] sm:$0xff]
    %v123 = vld [vmem:[#allocation5 + $0xa8] sm:$0xff]
    %v124 = vld [vmem:[#allocation5 + $0xb0] sm:$0xff]
    %v125 = vld [vmem:[#allocation5 + $0xb8] sm:$0xff]
    %v126 = vld [vmem:[#allocation5 + $0xc0] sm:$0xff]
    %v127 = vld [vmem:[#allocation5 + $0xc8] sm:$0xff]
    %v128 = vld [vmem:[#allocation5 + $0xd0] sm:$0xff]
    %v129 = vld [vmem:[#allocation5 + $0xd8] sm:$0xff]
    %v130 = vld [vmem:[#allocation5 + $0xe0] sm:$0xff]
    %v131 = vld [vmem:[#allocation5 + $0xe8] sm:$0xff]
    %v132 = vld [vmem:[#allocation5 + $0xf0] sm:$0xff]
    %v133 = vld [vmem:[#allocation5 + $0xf8] sm:$0xff]
    %v134 = vld [vmem:[%s2] sm:$0x3]
    %v135 = vpack.c.bf16 %v100, %v100
    %v136 = vpack.c.bf16 %v101, %v101
    %v138 = vlaneseq
    %v139 = vshrl.u32 %v138, 7
    %v140 = vsub.s32 0, %v139
    %v141 = vrot.slane %v134, %v140
    %v142 = vlaneseq
    %v143 = vshrl.u32 %v142, 7
    %v144 = vsub.s32 1, %v143
    %v145 = vrot.slane %v134, %v144
    %v180 = vunpack.c.l.b16 %v102
    %v181 = vunpack.c.h.b16 %v102
    %v182 = vunpack.c.l.b16 %v103
    %v183 = vunpack.c.h.b16 %v103
    %v184 = vunpack.c.l.b16 %v104
    %v185 = vunpack.c.h.b16 %v104
    %v186 = vunpack.c.l.b16 %v105
    %v187 = vunpack.c.h.b16 %v105
    %v188 = vunpack.c.l.b16 %v106
    %v189 = vunpack.c.h.b16 %v106
    %v190 = vunpack.c.l.b16 %v107
    %v191 = vunpack.c.h.b16 %v107
    %v192 = vunpack.c.l.b16 %v108
    %v193 = vunpack.c.h.b16 %v108
    %v194 = vunpack.c.l.b16 %v109
    %v195 = vunpack.c.h.b16 %v109
    %v196 = vunpack.c.l.b16 %v110
    %v197 = vunpack.c.h.b16 %v110
    %v198 = vunpack.c.l.b16 %v111
    %v199 = vunpack.c.h.b16 %v111
    %v200 = vunpack.c.l.b16 %v112
    %v201 = vunpack.c.h.b16 %v112
    %v202 = vunpack.c.l.b16 %v113
    %v203 = vunpack.c.h.b16 %v113
    %v204 = vunpack.c.l.b16 %v114
    %v205 = vunpack.c.h.b16 %v114
    %v206 = vunpack.c.l.b16 %v115
    %v207 = vunpack.c.h.b16 %v115
    %v208 = vunpack.c.l.b16 %v116
    %v209 = vunpack.c.h.b16 %v116
    %v210 = vunpack.c.l.b16 %v117
    %v211 = vunpack.c.h.b16 %v117
    %v212 = vunpack.c.l.b16 %v118
    %v213 = vunpack.c.h.b16 %v118
    %v214 = vunpack.c.l.b16 %v119
    %v215 = vunpack.c.h.b16 %v119
    %v216 = vunpack.c.l.b16 %v120
    %v217 = vunpack.c.h.b16 %v120
    %v218 = vunpack.c.l.b16 %v121
    %v219 = vunpack.c.h.b16 %v121
    %v220 = vunpack.c.l.b16 %v122
    %v221 = vunpack.c.h.b16 %v122
    %v222 = vunpack.c.l.b16 %v123
    %v223 = vunpack.c.h.b16 %v123
    %v224 = vunpack.c.l.b16 %v124
    %v225 = vunpack.c.h.b16 %v124
    %v226 = vunpack.c.l.b16 %v125
    %v227 = vunpack.c.h.b16 %v125
    %v228 = vunpack.c.l.b16 %v126
    %v229 = vunpack.c.h.b16 %v126
    %v230 = vunpack.c.l.b16 %v127
    %v231 = vunpack.c.h.b16 %v127
    %v232 = vunpack.c.l.b16 %v128
    %v233 = vunpack.c.h.b16 %v128
    %v234 = vunpack.c.l.b16 %v129
    %v235 = vunpack.c.h.b16 %v129
    %v236 = vunpack.c.l.b16 %v130
    %v237 = vunpack.c.h.b16 %v130
    %v238 = vunpack.c.l.b16 %v131
    %v239 = vunpack.c.h.b16 %v131
    %v240 = vunpack.c.l.b16 %v132
    %v241 = vunpack.c.h.b16 %v132
    %v242 = vunpack.c.l.b16 %v133
    %v243 = vunpack.c.h.b16 %v133
    %v244 = vpack.c.b16 %v182, %v180
    %v245 = vpack.c.b16 %v183, %v181
    %v246 = vpack.c.b16 %v186, %v184
    %v247 = vpack.c.b16 %v187, %v185
    %v248 = vpack.c.b16 %v190, %v188
    %v249 = vpack.c.b16 %v191, %v189
    %v250 = vpack.c.b16 %v194, %v192
    %v251 = vpack.c.b16 %v195, %v193
    %v252 = vpack.c.b16 %v198, %v196
    %v253 = vpack.c.b16 %v199, %v197
    %v254 = vpack.c.b16 %v202, %v200
    %v255 = vpack.c.b16 %v203, %v201
    %v256 = vpack.c.b16 %v206, %v204
    %v257 = vpack.c.b16 %v207, %v205
    %v258 = vpack.c.b16 %v210, %v208
    %v259 = vpack.c.b16 %v211, %v209
    %v260 = vpack.c.b16 %v214, %v212
    %v261 = vpack.c.b16 %v215, %v213
    %v262 = vpack.c.b16 %v218, %v216
    %v263 = vpack.c.b16 %v219, %v217
    %v264 = vpack.c.b16 %v222, %v220
    %v265 = vpack.c.b16 %v223, %v221
    %v266 = vpack.c.b16 %v226, %v224
    %v267 = vpack.c.b16 %v227, %v225
    %v268 = vpack.c.b16 %v230, %v228
    %v269 = vpack.c.b16 %v231, %v229
    %v270 = vpack.c.b16 %v234, %v232
    %v271 = vpack.c.b16 %v235, %v233
    %v272 = vpack.c.b16 %v238, %v236
    %v273 = vpack.c.b16 %v239, %v237
    %v274 = vpack.c.b16 %v242, %v240
    %v275 = vpack.c.b16 %v243, %v241
    %308 = vmatprep.subr.bf16.mxu0 %v259
    %309 = vmatpush1.bf16.msra.mxu0 %v258
    %310 = vmatprep.subr.bf16.mxu0 %v257
    %311 = vmatpush1.bf16.msra.mxu0 %v256
    %312 = vmatprep.subr.bf16.mxu0 %v255
    %313 = vmatpush1.bf16.msra.mxu0 %v254
    %314 = vmatprep.subr.bf16.mxu0 %v253
    %315 = vmatpush1.bf16.msra.mxu0 %v252
    %316 = vmatprep.subr.bf16.mxu0 %v251
    %317 = vmatpush1.bf16.msra.mxu0 %v250
    %318 = vmatprep.subr.bf16.mxu0 %v249
    %319 = vmatpush1.bf16.msra.mxu0 %v248
    %320 = vmatprep.subr.bf16.mxu0 %v247
    %321 = vmatpush1.bf16.msra.mxu0 %v246
    %322 = vmatprep.subr.bf16.mxu0 %v245
    %323 = vmatpush1.bf16.msra.mxu0 %v244
    %324 = vmatprep.subr.bf16.mxu0 %v275
    %325 = vmatpush2.bf16.msra.mxu0 %v274
    %326 = vmatprep.subr.bf16.mxu0 %v273
    %327 = vmatpush2.bf16.msra.mxu0 %v272
    %328 = vmatprep.subr.bf16.mxu0 %v271
    %329 = vmatpush2.bf16.msra.mxu0 %v270
    %330 = vmatprep.subr.bf16.mxu0 %v269
    %331 = vmatpush2.bf16.msra.mxu0 %v268
    %332 = vmatprep.subr.bf16.mxu0 %v267
    %333 = vmatpush2.bf16.msra.mxu0 %v266
    %334 = vmatprep.subr.bf16.mxu0 %v265
    %335 = vmatpush2.bf16.msra.mxu0 %v264
    %336 = vmatprep.subr.bf16.mxu0 %v263
    %337 = vmatpush2.bf16.msra.mxu0 %v262
    %338 = vmatprep.subr.bf16.mxu0 %v261
    %339 = vmatpush2.bf16.msra.mxu0 %v260
    %340 = vmatprep.mubr.bf16.mxu0 %v136
    %341 = vmatmul.mubr.bf16.gmra.mxu0 %v135
    %v342 = vpop.f32.mrf.mxu0
    %v343 = vadd.f32 %v141, %v342
    %v344 = vpop.f32.mrf.mxu0
    %v345 = vadd.f32 %v145, %v344
    %v346 = vpop.f32.mrf.mxu0
    %v347 = vpop.f32.mrf.mxu0
    %348 = vdwg.mxu0
    %vm349 = vcmp.gt.f32.partialorder %v343, 0.0
    %vm350 = vcmp.gt.f32.partialorder %v345, 0.0
    %v351 = vmul.f32 %v343, 0.01
    %v352 = vmul.f32 %v345, 0.01
    %v353 = vsel %vm349, %v343, %v351
    %v354 = vsel %vm350, %v345, %v352
    %v355 = vld [vmem:[#allocation7] sm:$0xff]
    %v356 = vld [vmem:[#allocation7 + $0x8] sm:$0xff]
    %v357 = vld [vmem:[#allocation7 + $0x10] sm:$0xff]
    %v358 = vld [vmem:[#allocation7 + $0x18] sm:$0xff]
    %v359 = vld [vmem:[#allocation7 + $0x20] sm:$0xff]
    %v360 = vld [vmem:[#allocation7 + $0x28] sm:$0xff]
    %v361 = vld [vmem:[#allocation7 + $0x30] sm:$0xff]
    %v362 = vld [vmem:[#allocation7 + $0x38] sm:$0xff]
    %v363 = vld [vmem:[#allocation7 + $0x40] sm:$0xff]
    %v364 = vld [vmem:[#allocation7 + $0x48] sm:$0xff]
    %v365 = vld [vmem:[#allocation7 + $0x50] sm:$0xff]
    %v366 = vld [vmem:[#allocation7 + $0x58] sm:$0xff]
    %v367 = vld [vmem:[#allocation7 + $0x60] sm:$0xff]
    %v368 = vld [vmem:[#allocation7 + $0x68] sm:$0xff]
    %v369 = vld [vmem:[#allocation7 + $0x70] sm:$0xff]
    %v370 = vld [vmem:[#allocation7 + $0x78] sm:$0xff]
    %v371 = vld [vmem:[#allocation7 + $0x80] sm:$0xff]
    %v372 = vld [vmem:[#allocation7 + $0x88] sm:$0xff]
    %v373 = vld [vmem:[#allocation7 + $0x90] sm:$0xff]
    %v374 = vld [vmem:[#allocation7 + $0x98] sm:$0xff]
    %v375 = vld [vmem:[#allocation7 + $0xa0] sm:$0xff]
    %v376 = vld [vmem:[#allocation7 + $0xa8] sm:$0xff]
    %v377 = vld [vmem:[#allocation7 + $0xb0] sm:$0xff]
    %v378 = vld [vmem:[#allocation7 + $0xb8] sm:$0xff]
    %v379 = vld [vmem:[#allocation7 + $0xc0] sm:$0xff]
    %v380 = vld [vmem:[#allocation7 + $0xc8] sm:$0xff]
    %v381 = vld [vmem:[#allocation7 + $0xd0] sm:$0xff]
    %v382 = vld [vmem:[#allocation7 + $0xd8] sm:$0xff]
    %v383 = vld [vmem:[#allocation7 + $0xe0] sm:$0xff]
    %v384 = vld [vmem:[#allocation7 + $0xe8] sm:$0xff]
    %v385 = vld [vmem:[#allocation7 + $0xf0] sm:$0xff]
    %v386 = vld [vmem:[#allocation7 + $0xf8] sm:$0xff]
    %v387 = vld [vmem:[%s4] sm:$0x3]
    %v388 = vpack.c.bf16 %v353, %v353
    %v389 = vpack.c.bf16 %v354, %v354
    %v391 = vlaneseq
    %v392 = vshrl.u32 %v391, 7
    %v393 = vsub.s32 0, %v392
    %v394 = vrot.slane %v387, %v393
    %v395 = vlaneseq
    %v396 = vshrl.u32 %v395, 7
    %v397 = vsub.s32 1, %v396
    %v398 = vrot.slane %v387, %v397
    %v433 = vunpack.c.l.b16 %v355
    %v434 = vunpack.c.h.b16 %v355
    %v435 = vunpack.c.l.b16 %v356
    %v436 = vunpack.c.h.b16 %v356
    %v437 = vunpack.c.l.b16 %v357
    %v438 = vunpack.c.h.b16 %v357
    %v439 = vunpack.c.l.b16 %v358
    %v440 = vunpack.c.h.b16 %v358
    %v441 = vunpack.c.l.b16 %v359
    %v442 = vunpack.c.h.b16 %v359
    %v443 = vunpack.c.l.b16 %v360
    %v444 = vunpack.c.h.b16 %v360
    %v445 = vunpack.c.l.b16 %v361
    %v446 = vunpack.c.h.b16 %v361
    %v447 = vunpack.c.l.b16 %v362
    %v448 = vunpack.c.h.b16 %v362
    %v449 = vunpack.c.l.b16 %v363
    %v450 = vunpack.c.h.b16 %v363
    %v451 = vunpack.c.l.b16 %v364
    %v452 = vunpack.c.h.b16 %v364
    %v453 = vunpack.c.l.b16 %v365
    %v454 = vunpack.c.h.b16 %v365
    %v455 = vunpack.c.l.b16 %v366
    %v456 = vunpack.c.h.b16 %v366
    %v457 = vunpack.c.l.b16 %v367
    %v458 = vunpack.c.h.b16 %v367
    %v459 = vunpack.c.l.b16 %v368
    %v460 = vunpack.c.h.b16 %v368
    %v461 = vunpack.c.l.b16 %v369
    %v462 = vunpack.c.h.b16 %v369
    %v463 = vunpack.c.l.b16 %v370
    %v464 = vunpack.c.h.b16 %v370
    %v465 = vunpack.c.l.b16 %v371
    %v466 = vunpack.c.h.b16 %v371
    %v467 = vunpack.c.l.b16 %v372
    %v468 = vunpack.c.h.b16 %v372
    %v469 = vunpack.c.l.b16 %v373
    %v470 = vunpack.c.h.b16 %v373
    %v471 = vunpack.c.l.b16 %v374
    %v472 = vunpack.c.h.b16 %v374
    %v473 = vunpack.c.l.b16 %v375
    %v474 = vunpack.c.h.b16 %v375
    %v475 = vunpack.c.l.b16 %v376
    %v476 = vunpack.c.h.b16 %v376
    %v477 = vunpack.c.l.b16 %v377
    %v478 = vunpack.c.h.b16 %v377
    %v479 = vunpack.c.l.b16 %v378
    %v480 = vunpack.c.h.b16 %v378
    %v481 = vunpack.c.l.b16 %v379
    %v482 = vunpack.c.h.b16 %v379
    %v483 = vunpack.c.l.b16 %v380
    %v484 = vunpack.c.h.b16 %v380
    %v485 = vunpack.c.l.b16 %v381
    %v486 = vunpack.c.h.b16 %v381
    %v487 = vunpack.c.l.b16 %v382
    %v488 = vunpack.c.h.b16 %v382
    %v489 = vunpack.c.l.b16 %v383
    %v490 = vunpack.c.h.b16 %v383
    %v491 = vunpack.c.l.b16 %v384
    %v492 = vunpack.c.h.b16 %v384
    %v493 = vunpack.c.l.b16 %v385
    %v494 = vunpack.c.h.b16 %v385
    %v495 = vunpack.c.l.b16 %v386
    %v496 = vunpack.c.h.b16 %v386
    %v497 = vpack.c.b16 %v435, %v433
    %v498 = vpack.c.b16 %v436, %v434
    %v499 = vpack.c.b16 %v439, %v437
    %v500 = vpack.c.b16 %v440, %v438
    %v501 = vpack.c.b16 %v443, %v441
    %v502 = vpack.c.b16 %v444, %v442
    %v503 = vpack.c.b16 %v447, %v445
    %v504 = vpack.c.b16 %v448, %v446
    %v505 = vpack.c.b16 %v451, %v449
    %v506 = vpack.c.b16 %v452, %v450
    %v507 = vpack.c.b16 %v455, %v453
    %v508 = vpack.c.b16 %v456, %v454
    %v509 = vpack.c.b16 %v459, %v457
    %v510 = vpack.c.b16 %v460, %v458
    %v511 = vpack.c.b16 %v463, %v461
    %v512 = vpack.c.b16 %v464, %v462
    %v513 = vpack.c.b16 %v467, %v465
    %v514 = vpack.c.b16 %v468, %v466
    %v515 = vpack.c.b16 %v471, %v469
    %v516 = vpack.c.b16 %v472, %v470
    %v517 = vpack.c.b16 %v475, %v473
    %v518 = vpack.c.b16 %v476, %v474
    %v519 = vpack.c.b16 %v479, %v477
    %v520 = vpack.c.b16 %v480, %v478
    %v521 = vpack.c.b16 %v483, %v481
    %v522 = vpack.c.b16 %v484, %v482
    %v523 = vpack.c.b16 %v487, %v485
    %v524 = vpack.c.b16 %v488, %v486
    %v525 = vpack.c.b16 %v491, %v489
    %v526 = vpack.c.b16 %v492, %v490
    %v527 = vpack.c.b16 %v495, %v493
    %v528 = vpack.c.b16 %v496, %v494
    %561 = vmatprep.subr.bf16.mxu0 %v512
    %562 = vmatpush1.bf16.msra.mxu0 %v511
    %563 = vmatprep.subr.bf16.mxu0 %v510
    %564 = vmatpush1.bf16.msra.mxu0 %v509
    %565 = vmatprep.subr.bf16.mxu0 %v508
    %566 = vmatpush1.bf16.msra.mxu0 %v507
    %567 = vmatprep.subr.bf16.mxu0 %v506
    %568 = vmatpush1.bf16.msra.mxu0 %v505
    %569 = vmatprep.subr.bf16.mxu0 %v504
    %570 = vmatpush1.bf16.msra.mxu0 %v503
    %571 = vmatprep.subr.bf16.mxu0 %v502
    %572 = vmatpush1.bf16.msra.mxu0 %v501
    %573 = vmatprep.subr.bf16.mxu0 %v500
    %574 = vmatpush1.bf16.msra.mxu0 %v499
    %575 = vmatprep.subr.bf16.mxu0 %v498
    %576 = vmatpush1.bf16.msra.mxu0 %v497
    %577 = vmatprep.subr.bf16.mxu0 %v528
    %578 = vmatpush2.bf16.msra.mxu0 %v527
    %579 = vmatprep.subr.bf16.mxu0 %v526
    %580 = vmatpush2.bf16.msra.mxu0 %v525
    %581 = vmatprep.subr.bf16.mxu0 %v524
    %582 = vmatpush2.bf16.msra.mxu0 %v523
    %583 = vmatprep.subr.bf16.mxu0 %v522
    %584 = vmatpush2.bf16.msra.mxu0 %v521
    %585 = vmatprep.subr.bf16.mxu0 %v520
    %586 = vmatpush2.bf16.msra.mxu0 %v519
    %587 = vmatprep.subr.bf16.mxu0 %v518
    %588 = vmatpush2.bf16.msra.mxu0 %v517
    %589 = vmatprep.subr.bf16.mxu0 %v516
    %590 = vmatpush2.bf16.msra.mxu0 %v515
    %591 = vmatprep.subr.bf16.mxu0 %v514
    %592 = vmatpush2.bf16.msra.mxu0 %v513
    %593 = vmatprep.mubr.bf16.mxu0 %v389
    %594 = vmatmul.mubr.bf16.gmra.mxu0 %v388
    %v595 = vpop.f32.mrf.mxu0
    %v596 = vadd.f32 %v394, %v595
    %v597 = vpop.f32.mrf.mxu0
    %v598 = vadd.f32 %v398, %v597
    %v599 = vpop.f32.mrf.mxu0
    %v600 = vpop.f32.mrf.mxu0
    %601 = vdwg.mxu0
    %v602 = vadd.f32 %v596, %v100
    %v603 = vadd.f32 %v598, %v101
    %v604 = vmax.f32 %v602, 0.0
    %v605 = vmax.f32 %v603, 0.0
    %v606 = vld [vmem:[#allocation8] sm:$0xff]
    %v607 = vld [vmem:[#allocation8 + $0x8] sm:$0xff]
    %v608 = vld [vmem:[#allocation8 + $0x10] sm:$0xff]
    %v609 = vld [vmem:[#allocation8 + $0x18] sm:$0xff]
    %v610 = vld [vmem:[#allocation8 + $0x20] sm:$0xff]
    %v611 = vld [vmem:[#allocation8 + $0x28] sm:$0xff]
    %v612 = vld [vmem:[#allocation8 + $0x30] sm:$0xff]
    %v613 = vld [vmem:[#allocation8 + $0x38] sm:$0xff]
    %v614 = vld [vmem:[#allocation8 + $0x40] sm:$0xff]
    %v615 = vld [vmem:[#allocation8 + $0x48] sm:$0xff]
    %v616 = vld [vmem:[#allocation8 + $0x50] sm:$0xff]
    %v617 = vld [vmem:[#allocation8 + $0x58] sm:$0xff]
    %v618 = vld [vmem:[#allocation8 + $0x60] sm:$0xff]
    %v619 = vld [vmem:[#allocation8 + $0x68] sm:$0xff]
    %v620 = vld [vmem:[#allocation8 + $0x70] sm:$0xff]
    %v621 = vld [vmem:[#allocation8 + $0x78] sm:$0xff]
    %v622 = vld [vmem:[#allocation8 + $0x80] sm:$0xff]
    %v623 = vld [vmem:[#allocation8 + $0x88] sm:$0xff]
    %v624 = vld [vmem:[#allocation8 + $0x90] sm:$0xff]
    %v625 = vld [vmem:[#allocation8 + $0x98] sm:$0xff]
    %v626 = vld [vmem:[#allocation8 + $0xa0] sm:$0xff]
    %v627 = vld [vmem:[#allocation8 + $0xa8] sm:$0xff]
    %v628 = vld [vmem:[#allocation8 + $0xb0] sm:$0xff]
    %v629 = vld [vmem:[#allocation8 + $0xb8] sm:$0xff]
    %v630 = vld [vmem:[#allocation8 + $0xc0] sm:$0xff]
    %v631 = vld [vmem:[#allocation8 + $0xc8] sm:$0xff]
    %v632 = vld [vmem:[#allocation8 + $0xd0] sm:$0xff]
    %v633 = vld [vmem:[#allocation8 + $0xd8] sm:$0xff]
    %v634 = vld [vmem:[#allocation8 + $0xe0] sm:$0xff]
    %v635 = vld [vmem:[#allocation8 + $0xe8] sm:$0xff]
    %v636 = vld [vmem:[#allocation8 + $0xf0] sm:$0xff]
    %v637 = vld [vmem:[#allocation8 + $0xf8] sm:$0xff]
    %v638 = vld [vmem:[%s6] sm:$0x3]
    %v639 = vpack.c.bf16 %v604, %v604
    %v640 = vpack.c.bf16 %v605, %v605
    %v642 = vlaneseq
    %v643 = vshrl.u32 %v642, 7
    %v644 = vsub.s32 0, %v643
    %v645 = vrot.slane %v638, %v644
    %v646 = vlaneseq
    %v647 = vshrl.u32 %v646, 7
    %v648 = vsub.s32 1, %v647
    %v649 = vrot.slane %v638, %v648
    %v684 = vunpack.c.l.b16 %v606
    %v685 = vunpack.c.h.b16 %v606
    %v686 = vunpack.c.l.b16 %v607
    %v687 = vunpack.c.h.b16 %v607
    %v688 = vunpack.c.l.b16 %v608
    %v689 = vunpack.c.h.b16 %v608
    %v690 = vunpack.c.l.b16 %v609
    %v691 = vunpack.c.h.b16 %v609
    %v692 = vunpack.c.l.b16 %v610
    %v693 = vunpack.c.h.b16 %v610
    %v694 = vunpack.c.l.b16 %v611
    %v695 = vunpack.c.h.b16 %v611
    %v696 = vunpack.c.l.b16 %v612
    %v697 = vunpack.c.h.b16 %v612
    %v698 = vunpack.c.l.b16 %v613
    %v699 = vunpack.c.h.b16 %v613
    %v700 = vunpack.c.l.b16 %v614
    %v701 = vunpack.c.h.b16 %v614
    %v702 = vunpack.c.l.b16 %v615
    %v703 = vunpack.c.h.b16 %v615
    %v704 = vunpack.c.l.b16 %v616
    %v705 = vunpack.c.h.b16 %v616
    %v706 = vunpack.c.l.b16 %v617
    %v707 = vunpack.c.h.b16 %v617
    %v708 = vunpack.c.l.b16 %v618
    %v709 = vunpack.c.h.b16 %v618
    %v710 = vunpack.c.l.b16 %v619
    %v711 = vunpack.c.h.b16 %v619
    %v712 = vunpack.c.l.b16 %v620
    %v713 = vunpack.c.h.b16 %v620
    %v714 = vunpack.c.l.b16 %v621
    %v715 = vunpack.c.h.b16 %v621
    %v716 = vunpack.c.l.b16 %v622
    %v717 = vunpack.c.h.b16 %v622
    %v718 = vunpack.c.l.b16 %v623
    %v719 = vunpack.c.h.b16 %v623
    %v720 = vunpack.c.l.b16 %v624
    %v721 = vunpack.c.h.b16 %v624
    %v722 = vunpack.c.l.b16 %v625
    %v723 = vunpack.c.h.b16 %v625
    %v724 = vunpack.c.l.b16 %v626
    %v725 = vunpack.c.h.b16 %v626
    %v726 = vunpack.c.l.b16 %v627
    %v727 = vunpack.c.h.b16 %v627
    %v728 = vunpack.c.l.b16 %v628
    %v729 = vunpack.c.h.b16 %v628
    %v730 = vunpack.c.l.b16 %v629
    %v731 = vunpack.c.h.b16 %v629
    %v732 = vunpack.c.l.b16 %v630
    %v733 = vunpack.c.h.b16 %v630
    %v734 = vunpack.c.l.b16 %v631
    %v735 = vunpack.c.h.b16 %v631
    %v736 = vunpack.c.l.b16 %v632
    %v737 = vunpack.c.h.b16 %v632
    %v738 = vunpack.c.l.b16 %v633
    %v739 = vunpack.c.h.b16 %v633
    %v740 = vunpack.c.l.b16 %v634
    %v741 = vunpack.c.h.b16 %v634
    %v742 = vunpack.c.l.b16 %v635
    %v743 = vunpack.c.h.b16 %v635
    %v744 = vunpack.c.l.b16 %v636
    %v745 = vunpack.c.h.b16 %v636
    %v746 = vunpack.c.l.b16 %v637
    %v747 = vunpack.c.h.b16 %v637
    %v748 = vpack.c.b16 %v686, %v684
    %v749 = vpack.c.b16 %v687, %v685
    %v750 = vpack.c.b16 %v690, %v688
    %v751 = vpack.c.b16 %v691, %v689
    %v752 = vpack.c.b16 %v694, %v692
    %v753 = vpack.c.b16 %v695, %v693
    %v754 = vpack.c.b16 %v698, %v696
    %v755 = vpack.c.b16 %v699, %v697
    %v756 = vpack.c.b16 %v702, %v700
    %v757 = vpack.c.b16 %v703, %v701
    %v758 = vpack.c.b16 %v706, %v704
    %v759 = vpack.c.b16 %v707, %v705
    %v760 = vpack.c.b16 %v710, %v708
    %v761 = vpack.c.b16 %v711, %v709
    %v762 = vpack.c.b16 %v714, %v712
    %v763 = vpack.c.b16 %v715, %v713
    %v764 = vpack.c.b16 %v718, %v716
    %v765 = vpack.c.b16 %v719, %v717
    %v766 = vpack.c.b16 %v722, %v720
    %v767 = vpack.c.b16 %v723, %v721
    %v768 = vpack.c.b16 %v726, %v724
    %v769 = vpack.c.b16 %v727, %v725
    %v770 = vpack.c.b16 %v730, %v728
    %v771 = vpack.c.b16 %v731, %v729
    %v772 = vpack.c.b16 %v734, %v732
    %v773 = vpack.c.b16 %v735, %v733
    %v774 = vpack.c.b16 %v738, %v736
    %v775 = vpack.c.b16 %v739, %v737
    %v776 = vpack.c.b16 %v742, %v740
    %v777 = vpack.c.b16 %v743, %v741
    %v778 = vpack.c.b16 %v746, %v744
    %v779 = vpack.c.b16 %v747, %v745
    %812 = vmatprep.subr.bf16.mxu0 %v763
    %813 = vmatpush1.bf16.msra.mxu0 %v762
    %814 = vmatprep.subr.bf16.mxu0 %v761
    %815 = vmatpush1.bf16.msra.mxu0 %v760
    %816 = vmatprep.subr.bf16.mxu0 %v759
    %817 = vmatpush1.bf16.msra.mxu0 %v758
    %818 = vmatprep.subr.bf16.mxu0 %v757
    %819 = vmatpush1.bf16.msra.mxu0 %v756
    %820 = vmatprep.subr.bf16.mxu0 %v755
    %821 = vmatpush1.bf16.msra.mxu0 %v754
    %822 = vmatprep.subr.bf16.mxu0 %v753
    %823 = vmatpush1.bf16.msra.mxu0 %v752
    %824 = vmatprep.subr.bf16.mxu0 %v751
    %825 = vmatpush1.bf16.msra.mxu0 %v750
    %826 = vmatprep.subr.bf16.mxu0 %v749
    %827 = vmatpush1.bf16.msra.mxu0 %v748
    %828 = vmatprep.subr.bf16.mxu0 %v779
    %829 = vmatpush2.bf16.msra.mxu0 %v778
    %830 = vmatprep.subr.bf16.mxu0 %v777
    %831 = vmatpush2.bf16.msra.mxu0 %v776
    %832 = vmatprep.subr.bf16.mxu0 %v775
    %833 = vmatpush2.bf16.msra.mxu0 %v774
    %834 = vmatprep.subr.bf16.mxu0 %v773
    %835 = vmatpush2.bf16.msra.mxu0 %v772
    %836 = vmatprep.subr.bf16.mxu0 %v771
    %837 = vmatpush2.bf16.msra.mxu0 %v770
    %838 = vmatprep.subr.bf16.mxu0 %v769
    %839 = vmatpush2.bf16.msra.mxu0 %v768
    %840 = vmatprep.subr.bf16.mxu0 %v767
    %841 = vmatpush2.bf16.msra.mxu0 %v766
    %842 = vmatprep.subr.bf16.mxu0 %v765
    %843 = vmatpush2.bf16.msra.mxu0 %v764
    %844 = vmatprep.mubr.bf16.mxu0 %v640
    %845 = vmatmul.mubr.bf16.gmra.mxu0 %v639
    %v846 = vpop.f32.mrf.mxu0
    %v847 = vadd.f32 %v645, %v846
    %v848 = vpop.f32.mrf.mxu0
    %v849 = vadd.f32 %v649, %v848
    %v850 = vpop.f32.mrf.mxu0
    %v851 = vpop.f32.mrf.mxu0
    %852 = vdwg.mxu0
    %vm853 = vcmp.gt.f32.partialorder %v847, 0.0
    %vm854 = vcmp.gt.f32.partialorder %v849, 0.0
    %v855 = vmul.f32 %v847, 0.01
    %v856 = vmul.f32 %v849, 0.01
    %v857 = vsel %vm853, %v847, %v855
    %v858 = vsel %vm854, %v849, %v856
    %v859 = vld [vmem:[#allocation10] sm:$0xf]
    %v860 = vld [vmem:[#allocation10 + $0x4] sm:$0xf]
    %v861 = vld [vmem:[#allocation10 + $0x8] sm:$0xf]
    %v862 = vld [vmem:[#allocation10 + $0xc] sm:$0xf]
    %v863 = vld [vmem:[#allocation10 + $0x10] sm:$0xf]
    %v864 = vld [vmem:[#allocation10 + $0x14] sm:$0xf]
    %v865 = vld [vmem:[#allocation10 + $0x18] sm:$0xf]
    %v866 = vld [vmem:[#allocation10 + $0x1c] sm:$0xf]
    %v867 = vld [vmem:[#allocation10 + $0x20] sm:$0xf]
    %v868 = vld [vmem:[#allocation10 + $0x24] sm:$0xf]
    %v869 = vld [vmem:[#allocation10 + $0x28] sm:$0xf]
    %v870 = vld [vmem:[#allocation10 + $0x2c] sm:$0xf]
    %v871 = vld [vmem:[#allocation10 + $0x30] sm:$0xf]
    %v872 = vld [vmem:[#allocation10 + $0x34] sm:$0xf]
    %v873 = vld [vmem:[#allocation10 + $0x38] sm:$0xf]
    %v874 = vld [vmem:[#allocation10 + $0x3c] sm:$0xf]
    %v875 = vld [vmem:[#allocation10 + $0x40] sm:$0xf]
    %v876 = vld [vmem:[#allocation10 + $0x44] sm:$0xf]
    %v877 = vld [vmem:[#allocation10 + $0x48] sm:$0xf]
    %v878 = vld [vmem:[#allocation10 + $0x4c] sm:$0xf]
    %v879 = vld [vmem:[#allocation10 + $0x50] sm:$0xf]
    %v880 = vld [vmem:[#allocation10 + $0x54] sm:$0xf]
    %v881 = vld [vmem:[#allocation10 + $0x58] sm:$0xf]
    %v882 = vld [vmem:[#allocation10 + $0x5c] sm:$0xf]
    %v883 = vld [vmem:[#allocation10 + $0x60] sm:$0xf]
    %v884 = vld [vmem:[#allocation10 + $0x64] sm:$0xf]
    %v885 = vld [vmem:[#allocation10 + $0x68] sm:$0xf]
    %v886 = vld [vmem:[#allocation10 + $0x6c] sm:$0xf]
    %v887 = vld [vmem:[#allocation10 + $0x70] sm:$0xf]
    %v888 = vld [vmem:[#allocation10 + $0x74] sm:$0xf]
    %v889 = vld [vmem:[#allocation10 + $0x78] sm:$0xf]
    %v890 = vld [vmem:[#allocation10 + $0x7c] sm:$0xf]
    %v891 = vld [vmem:[%s8] sm:$0x1]
    %v892 = vpack.c.bf16 %v857, %v857
    %v893 = vpack.c.bf16 %v858, %v858
    %v895 = vlaneseq
    %v896 = vshrl.u32 %v895, 7
    %v897 = vsub.s32 0, %v896
    %v898 = vrot.slane %v891, %v897
    %v932 = vunpack.c.l.b16 %v859
    %v933 = vunpack.c.l.b16 %v860
    %v934 = vunpack.c.l.b16 %v861
    %v935 = vunpack.c.l.b16 %v862
    %v936 = vunpack.c.l.b16 %v863
    %v937 = vunpack.c.l.b16 %v864
    %v938 = vunpack.c.l.b16 %v865
    %v939 = vunpack.c.l.b16 %v866
    %v940 = vunpack.c.l.b16 %v867
    %v941 = vunpack.c.l.b16 %v868
    %v942 = vunpack.c.l.b16 %v869
    %v943 = vunpack.c.l.b16 %v870
    %v944 = vunpack.c.l.b16 %v871
    %v945 = vunpack.c.l.b16 %v872
    %v946 = vunpack.c.l.b16 %v873
    %v947 = vunpack.c.l.b16 %v874
    %v948 = vunpack.c.l.b16 %v875
    %v949 = vunpack.c.l.b16 %v876
    %v950 = vunpack.c.l.b16 %v877
    %v951 = vunpack.c.l.b16 %v878
    %v952 = vunpack.c.l.b16 %v879
    %v953 = vunpack.c.l.b16 %v880
    %v954 = vunpack.c.l.b16 %v881
    %v955 = vunpack.c.l.b16 %v882
    %v956 = vunpack.c.l.b16 %v883
    %v957 = vunpack.c.l.b16 %v884
    %v958 = vunpack.c.l.b16 %v885
    %v959 = vunpack.c.l.b16 %v886
    %v960 = vunpack.c.l.b16 %v887
    %v961 = vunpack.c.l.b16 %v888
    %v962 = vunpack.c.l.b16 %v889
    %v963 = vunpack.c.l.b16 %v890
    %v964 = vpack.c.b16 %v933, %v932
    %v965 = vpack.c.b16 %v935, %v934
    %v966 = vpack.c.b16 %v937, %v936
    %v967 = vpack.c.b16 %v939, %v938
    %v968 = vpack.c.b16 %v941, %v940
    %v969 = vpack.c.b16 %v943, %v942
    %v970 = vpack.c.b16 %v945, %v944
    %v971 = vpack.c.b16 %v947, %v946
    %v972 = vpack.c.b16 %v949, %v948
    %v973 = vpack.c.b16 %v951, %v950
    %v974 = vpack.c.b16 %v953, %v952
    %v975 = vpack.c.b16 %v955, %v954
    %v976 = vpack.c.b16 %v957, %v956
    %v977 = vpack.c.b16 %v959, %v958
    %v978 = vpack.c.b16 %v961, %v960
    %v979 = vpack.c.b16 %v963, %v962
    %996 = vmatprep.subr.bf16.mxu0 0
    %997 = vmatpush1.bf16.msra.mxu0 %v971
    %998 = vmatprep.subr.bf16.mxu0 0
    %999 = vmatpush1.bf16.msra.mxu0 %v970
    %1000 = vmatprep.subr.bf16.mxu0 0
    %1001 = vmatpush1.bf16.msra.mxu0 %v969
    %1002 = vmatprep.subr.bf16.mxu0 0
    %1003 = vmatpush1.bf16.msra.mxu0 %v968
    %1004 = vmatprep.subr.bf16.mxu0 0
    %1005 = vmatpush1.bf16.msra.mxu0 %v967
    %1006 = vmatprep.subr.bf16.mxu0 0
    %1007 = vmatpush1.bf16.msra.mxu0 %v966
    %1008 = vmatprep.subr.bf16.mxu0 0
    %1009 = vmatpush1.bf16.msra.mxu0 %v965
    %1010 = vmatprep.subr.bf16.mxu0 0
    %1011 = vmatpush1.bf16.msra.mxu0 %v964
    %1012 = vmatprep.subr.bf16.mxu0 0
    %1013 = vmatpush2.bf16.msra.mxu0 %v979
    %1014 = vmatprep.subr.bf16.mxu0 0
    %1015 = vmatpush2.bf16.msra.mxu0 %v978
    %1016 = vmatprep.subr.bf16.mxu0 0
    %1017 = vmatpush2.bf16.msra.mxu0 %v977
    %1018 = vmatprep.subr.bf16.mxu0 0
    %1019 = vmatpush2.bf16.msra.mxu0 %v976
    %1020 = vmatprep.subr.bf16.mxu0 0
    %1021 = vmatpush2.bf16.msra.mxu0 %v975
    %1022 = vmatprep.subr.bf16.mxu0 0
    %1023 = vmatpush2.bf16.msra.mxu0 %v974
    %1024 = vmatprep.subr.bf16.mxu0 0
    %1025 = vmatpush2.bf16.msra.mxu0 %v973
    %1026 = vmatprep.subr.bf16.mxu0 0
    %1027 = vmatpush2.bf16.msra.mxu0 %v972
    %1028 = vmatprep.mubr.bf16.mxu0 %v893
    %1029 = vmatmul.mubr.bf16.gmra.mxu0 %v892
    %v1030 = vpop.f32.mrf.mxu0
    %v1031 = vadd.f32 %v898, %v1030
    %v1032 = vpop.f32.mrf.mxu0
    %v1033 = vpop.f32.mrf.mxu0
    %v1034 = vpop.f32.mrf.mxu0
    %1035 = vdwg.mxu0
    %v1036 = vtanh.pop %v1031
    %1037 = vst [vmem:[#allocation11] sm:$0xff] %v1036
    // Predicated region
    $region58: #{tpu_custom_call.1} parent=1 // pred_check
      _
    $region59: #{tpu_custom_call.1} parent=1 // pred_check_branch
      %1039 = sbr.rel (0) target = $region61
    $region60: #{tpu_custom_call.1} parent=1 // pred_region
      %s1041 = ssub.s32 128, 128
      %1042 = vsyncadd [#allocation4], %s1041
      %s1044 = sshll.u32 [#allocation11], 4
      %s1045 = int_to_ptr.vmem [resolvable:$true] %s1044
      %1047 = dma.vmem_to_hbm [thread:$0]  %s1045, 128, %s9, [#allocation4]
    $region61: #{tpu_custom_call.1} parent=1 // pred_fallthru
      _
    // Predicated region
    $region62: #{tpu_custom_call.1} parent=1 // pred_check
      _
    $region63: #{tpu_custom_call.1} parent=1 // pred_check_branch
      %1049 = sbr.rel (0) target = $region65
    $region64: #{tpu_custom_call.1} parent=1 // pred_region
      %1050 = dma.done [#allocation4], 128
    $region65: #{tpu_custom_call.1} parent=1 // pred_fallthru
      _
    %1051 = vsyncpa [#allocation3], 1
    %1052 = vsyncpa [#allocation6], 1
    %1053 = vsyncpa [#allocation9], 1
    %1054 = vsyncpa [#allocation4], 1

// kernel: tpu_custom_call.1
$region0: #{tpu_custom_call.1}
  #allocation0 [shape = 'u32[]', space=smem, size = 0x4, offset = 0x4, fixed_abs, tag = 'smem constant byte address 0x4 - core index']
  #allocation1 [shape = 'u32[144,128]{1,0:T(1,128)}', space=vmem, size = 0x12000, scoped, tag = 'internal scratch']
  %s0 = inlined_call_operand.hbm [shape: f32[8,256], index: 0, kind: input, shape index: {}]
  %s1 = inlined_call_operand.hbm [shape: bf16[256,256], index: 1, kind: input, shape index: {}]
  %s2 = inlined_call_operand.vmem [shape: f32[1,256], index: 2, kind: input, shape index: {}]
  %s3 = inlined_call_operand.hbm [shape: bf16[256,256], index: 3, kind: input, shape index: {}]
  %s4 = inlined_call_operand.vmem [shape: f32[1,256], index: 4, kind: input, shape index: {}]
  %s5 = inlined_call_operand.hbm [shape: bf16[256,256], index: 5, kind: input, shape index: {}]
  %s6 = inlined_call_operand.vmem [shape: f32[1,256], index: 6, kind: input, shape index: {}]
  %s7 = inlined_call_operand.hbm [shape: bf16[256,128], index: 7, kind: input, shape index: {}]
  %s8 = inlined_call_operand.vmem [shape: f32[1,128], index: 8, kind: input, shape index: {}]
  %s9 = inlined_call_operand.hbm [shape: f32[8,128], index: 9, kind: output, shape index: {}]
  %s10 = sld [smem:[#allocation0]]
  $region66: #{tpu_custom_call.1} parent=0
    _
  %s12 = ssub.s32 1, %s10
  %s13 = scalar_select 0, %s12, %s10
  $region1: #{tpu_custom_call.1} parent=0
    #allocation2 [shape = 'u8[8192]{0}', space=vmem, size = 0x2000, scoped, tag = 'input window, operand 0, single buffered']
    #allocation3 [shape = 's32[1]{0}', space=sflag, size = 0x4, scoped, tag = 'scoped memory for tpu_custom_call.1']
    #allocation4 [shape = 's32[1]{0}', space=sflag, size = 0x4, scoped, tag = 'scoped memory for tpu_custom_call.1']
    #allocation5 [shape = 'u8[131072]{0}', space=vmem, size = 0x20000, scoped, tag = 'input window, operand 1, single buffered']
    #allocation6 [shape = 's32[1]{0}', space=sflag, size = 0x4, scoped, tag = 'scoped memory for tpu_custom_call.1']
    #allocation7 [shape = 'u8[131072]{0}', space=vmem, size = 0x20000, scoped, tag = 'input window, operand 3, single buffered']
    #allocation8 [shape = 'u8[131072]{0}', space=vmem, size = 0x20000, scoped, tag = 'input window, operand 5, single buffered']
    #allocation9 [shape = 's32[1]{0}', space=sflag, size = 0x4, scoped, tag = 'scoped memory for tpu_custom_call.1']
    #allocation10 [shape = 'u8[65536]{0}', space=vmem, size = 0x10000, scoped, tag = 'input window, operand 7, single buffered']
    #allocation11 [shape = 'u8[4096]{0}', space=vmem, size = 0x1000, scoped, tag = 'output window, operand 0, single buffered']
    %14 = vsyncpa [#allocation3], 0
    %15 = vsyncpa [#allocation6], 0
    %16 = vsyncpa [#allocation9], 0
    %17 = vsyncpa [#allocation4], 0
    // Predicated region
    $region2: #{tpu_custom_call.1} parent=1 // pred_check
      _
    $region3: #{tpu_custom_call.1} parent=1 // pred_check_branch
      %19 = sbr.rel (0) target = $region5
    $region4: #{tpu_custom_call.1} parent=1 // pred_region
      %s21 = ssub.s32 256, 256
      %22 = vsyncadd [#allocation3], %s21
      %s24 = sshll.u32 [#allocation2], 4
      %s25 = int_to_ptr.vmem [resolvable:$true] %s24
      %27 = dma.hbm_to_vmem [thread:$0]  %s0, 256, %s25, [#allocation3]
    $region5: #{tpu_custom_call.1} parent=1 // pred_fallthru
      _
    // Predicated region
    $region6: #{tpu_custom_call.1} parent=1 // pred_check
      _
    $region7: #{tpu_custom_call.1} parent=1 // pred_check_branch
      %29 = sbr.rel (0) target = $region9
    $region8: #{tpu_custom_call.1} parent=1 // pred_region
      %s31 = ssub.s32 4096, 4096
      %32 = vsyncadd [#allocation6], %s31
      %s33 = sshll.u32 [#allocation5], 4
      %s34 = int_to_ptr.vmem [resolvable:$true] %s33
      %39 = dma.hbm_to_vmem [thread:$0]  %s1, 4096, %s34, [#allocation6], 128, 128, 8
    $region9: #{tpu_custom_call.1} parent=1 // pred_fallthru
      _
    // Predicated region
    $region10: #{tpu_custom_call.1} parent=1 // pred_check
      _
    $region11: #{tpu_custom_call.1} parent=1 // pred_check_branch
      %41 = sbr.rel (0) target = $region13
    $region12: #{tpu_custom_call.1} parent=1 // pred_region
      _
    $region13: #{tpu_custom_call.1} parent=1 // pred_fallthru
      _
    // Predicated region
    $region14: #{tpu_custom_call.1} parent=1 // pred_check
      _
    $region15: #{tpu_custom_call.1} parent=1 // pred_check_branch
      %43 = sbr.rel (0) target = $region17
    $region16: #{tpu_custom_call.1} parent=1 // pred_region
      %s45 = ssub.s32 4096, 4096
      %46 = vsyncadd [#allocation6], %s45
      %s47 = sshll.u32 [#allocation7], 4
      %s48 = int_to_ptr.vmem [resolvable:$true] %s47
      %53 = dma.hbm_to_vmem [thread:$0]  %s3, 4096, %s48, [#allocation6], 128, 128, 8
    $region17: #{tpu_custom_call.1} parent=1 // pred_fallthru
      _
    // Predicated region
    $region18: #{tpu_custom_call.1} parent=1 // pred_check
      _
    $region19: #{tpu_custom_call.1} parent=1 // pred_check_branch
      %55 = sbr.rel (0) target = $region21
    $region20: #{tpu_custom_call.1} parent=1 // pred_region
      _
    $region21: #{tpu_custom_call.1} parent=1 // pred_fallthru
      _
    // Predicated region
    $region22: #{tpu_custom_call.1} parent=1 // pred_check
      _
    $region23: #{tpu_custom_call.1} parent=1 // pred_check_branch
      %57 = sbr.rel (0) target = $region25
    $region24: #{tpu_custom_call.1} parent=1 // pred_region
      %s59 = ssub.s32 4096, 4096
      %60 = vsyncadd [#allocation9], %s59
      %s61 = sshll.u32 [#allocation8], 4
      %s62 = int_to_ptr.vmem [resolvable:$true] %s61
      %67 = dma.hbm_to_vmem [thread:$0]  %s5, 4096, %s62, [#allocation9], 128, 128, 8
    $region25: #{tpu_custom_call.1} parent=1 // pred_fallthru
      _
    // Predicated region
    $region26: #{tpu_custom_call.1} parent=1 // pred_check
      _
    $region27: #{tpu_custom_call.1} parent=1 // pred_check_branch
      %69 = sbr.rel (0) target = $region29
    $region28: #{tpu_custom_call.1} parent=1 // pred_region
      _
    $region29: #{tpu_custom_call.1} parent=1 // pred_fallthru
      _
    // Predicated region
    $region30: #{tpu_custom_call.1} parent=1 // pred_check
      _
    $region31: #{tpu_custom_call.1} parent=1 // pred_check_branch
      %71 = sbr.rel (0) target = $region33
    $region32: #{tpu_custom_call.1} parent=1 // pred_region
      %s73 = ssub.s32 2048, 2048
      %74 = vsyncadd [#allocation9], %s73
      %s75 = sshll.u32 [#allocation10], 4
      %s76 = int_to_ptr.vmem [resolvable:$true] %s75
      %81 = dma.hbm_to_vmem [thread:$0]  %s7, 2048, %s76, [#allocation9], 64, 64, 4
    $region33: #{tpu_custom_call.1} parent=1 // pred_fallthru
      _
    // Predicated region
    $region34: #{tpu_custom_call.1} parent=1 // pred_check
      _
    $region35: #{tpu_custom_call.1} parent=1 // pred_check_branch
      %83 = sbr.rel (0) target = $region37
    $region36: #{tpu_custom_call.1} parent=1 // pred_region
      _
    $region37: #{tpu_custom_call.1} parent=1 // pred_fallthru
      _
    // Predicated region
    $region38: #{tpu_custom_call.1} parent=1 // pred_check
      _
    $region39: #{tpu_custom_call.1} parent=1 // pred_check_branch
      %85 = sbr.rel (0) target = $region41
    $region40: #{tpu_custom_call.1} parent=1 // pred_region
      %86 = dma.done [#allocation3], 256
    $region41: #{tpu_custom_call.1} parent=1 // pred_fallthru
      _
    // Predicated region
    $region42: #{tpu_custom_call.1} parent=1 // pred_check
      _
    $region43: #{tpu_custom_call.1} parent=1 // pred_check_branch
      %88 = sbr.rel (0) target = $region45
    $region44: #{tpu_custom_call.1} parent=1 // pred_region
      %89 = dma.done [#allocation6], 4096
    $region45: #{tpu_custom_call.1} parent=1 // pred_fallthru
      _
    // Predicated region
    $region46: #{tpu_custom_call.1} parent=1 // pred_check
      _
    $region47: #{tpu_custom_call.1} parent=1 // pred_check_branch
      %91 = sbr.rel (0) target = $region49
    $region48: #{tpu_custom_call.1} parent=1 // pred_region
      %92 = dma.done [#allocation6], 4096
    $region49: #{tpu_custom_call.1} parent=1 // pred_fallthru
      _
    // Predicated region
    $region50: #{tpu_custom_call.1} parent=1 // pred_check
      _
    $region51: #{tpu_custom_call.1} parent=1 // pred_check_branch
      %94 = sbr.rel (0) target = $region53
    $region52: #{tpu_custom_call.1} parent=1 // pred_region
      %95 = dma.done [#allocation9], 4096
    $region53: #{tpu_custom_call.1} parent=1 // pred_fallthru
      _
    // Predicated region
    $region54: #{tpu_custom_call.1} parent=1 // pred_check
      _
    $region55: #{tpu_custom_call.1} parent=1 // pred_check_branch
      %97 = sbr.rel (0) target = $region57
    $region56: #{tpu_custom_call.1} parent=1 // pred_region
      %98 = dma.done [#allocation9], 2048
    $region57: #{tpu_custom_call.1} parent=1 // pred_fallthru
      _
    %v100 = vld [vmem:[#allocation2] sm:$0xff]
    %v101 = vld [vmem:[#allocation2 + $0x8] sm:$0xff]
    %v102 = vld [vmem:[#allocation5] sm:$0xff]
    %v103 = vld [vmem:[#allocation5 + $0x8] sm:$0xff]
    %v104 = vld [vmem:[#allocation5 + $0x10] sm:$0xff]
    %v105 = vld [vmem:[#allocation5 + $0x18] sm:$0xff]
    %v106 = vld [vmem:[#allocation5 + $0x20] sm:$0xff]
    %v107 = vld [vmem:[#allocation5 + $0x28] sm:$0xff]
    %v108 = vld [vmem:[#allocation5 + $0x30] sm:$0xff]
    %v109 = vld [vmem:[#allocation5 + $0x38] sm:$0xff]
    %v110 = vld [vmem:[#allocation5 + $0x40] sm:$0xff]
    %v111 = vld [vmem:[#allocation5 + $0x48] sm:$0xff]
    %v112 = vld [vmem:[#allocation5 + $0x50] sm:$0xff]
    %v113 = vld [vmem:[#allocation5 + $0x58] sm:$0xff]
    %v114 = vld [vmem:[#allocation5 + $0x60] sm:$0xff]
    %v115 = vld [vmem:[#allocation5 + $0x68] sm:$0xff]
    %v116 = vld [vmem:[#allocation5 + $0x70] sm:$0xff]
    %v117 = vld [vmem:[#allocation5 + $0x78] sm:$0xff]
    %v118 = vld [vmem:[#allocation5 + $0x80] sm:$0xff]
    %v119 = vld [vmem:[#allocation5 + $0x88] sm:$0xff]
    %v120 = vld [vmem:[#allocation5 + $0x90] sm:$0xff]
    %v121 = vld [vmem:[#allocation5 + $0x98] sm:$0xff]
    %v122 = vld [vmem:[#allocation5 + $0xa0] sm:$0xff]
    %v123 = vld [vmem:[#allocation5 + $0xa8] sm:$0xff]
    %v124 = vld [vmem:[#allocation5 + $0xb0] sm:$0xff]
    %v125 = vld [vmem:[#allocation5 + $0xb8] sm:$0xff]
    %v126 = vld [vmem:[#allocation5 + $0xc0] sm:$0xff]
    %v127 = vld [vmem:[#allocation5 + $0xc8] sm:$0xff]
    %v128 = vld [vmem:[#allocation5 + $0xd0] sm:$0xff]
    %v129 = vld [vmem:[#allocation5 + $0xd8] sm:$0xff]
    %v130 = vld [vmem:[#allocation5 + $0xe0] sm:$0xff]
    %v131 = vld [vmem:[#allocation5 + $0xe8] sm:$0xff]
    %v132 = vld [vmem:[#allocation5 + $0xf0] sm:$0xff]
    %v133 = vld [vmem:[#allocation5 + $0xf8] sm:$0xff]
    %v134 = vld [vmem:[%s2] sm:$0x3]
    %v135 = vpack.c.bf16 %v100, %v100
    %v136 = vpack.c.bf16 %v101, %v101
    %v138 = vlaneseq
    %v139 = vshrl.u32 %v138, 7
    %v140 = vsub.s32 0, %v139
    %v141 = vrot.slane %v134, %v140
    %v142 = vlaneseq
    %v143 = vshrl.u32 %v142, 7
    %v144 = vsub.s32 1, %v143
    %v145 = vrot.slane %v134, %v144
    %v180 = vunpack.c.l.b16 %v102
    %v181 = vunpack.c.h.b16 %v102
    %v182 = vunpack.c.l.b16 %v103
    %v183 = vunpack.c.h.b16 %v103
    %v184 = vunpack.c.l.b16 %v104
    %v185 = vunpack.c.h.b16 %v104
    %v186 = vunpack.c.l.b16 %v105
    %v187 = vunpack.c.h.b16 %v105
    %v188 = vunpack.c.l.b16 %v106
    %v189 = vunpack.c.h.b16 %v106
    %v190 = vunpack.c.l.b16 %v107
    %v191 = vunpack.c.h.b16 %v107
    %v192 = vunpack.c.l.b16 %v108
    %v193 = vunpack.c.h.b16 %v108
    %v194 = vunpack.c.l.b16 %v109
    %v195 = vunpack.c.h.b16 %v109
    %v196 = vunpack.c.l.b16 %v110
    %v197 = vunpack.c.h.b16 %v110
    %v198 = vunpack.c.l.b16 %v111
    %v199 = vunpack.c.h.b16 %v111
    %v200 = vunpack.c.l.b16 %v112
    %v201 = vunpack.c.h.b16 %v112
    %v202 = vunpack.c.l.b16 %v113
    %v203 = vunpack.c.h.b16 %v113
    %v204 = vunpack.c.l.b16 %v114
    %v205 = vunpack.c.h.b16 %v114
    %v206 = vunpack.c.l.b16 %v115
    %v207 = vunpack.c.h.b16 %v115
    %v208 = vunpack.c.l.b16 %v116
    %v209 = vunpack.c.h.b16 %v116
    %v210 = vunpack.c.l.b16 %v117
    %v211 = vunpack.c.h.b16 %v117
    %v212 = vunpack.c.l.b16 %v118
    %v213 = vunpack.c.h.b16 %v118
    %v214 = vunpack.c.l.b16 %v119
    %v215 = vunpack.c.h.b16 %v119
    %v216 = vunpack.c.l.b16 %v120
    %v217 = vunpack.c.h.b16 %v120
    %v218 = vunpack.c.l.b16 %v121
    %v219 = vunpack.c.h.b16 %v121
    %v220 = vunpack.c.l.b16 %v122
    %v221 = vunpack.c.h.b16 %v122
    %v222 = vunpack.c.l.b16 %v123
    %v223 = vunpack.c.h.b16 %v123
    %v224 = vunpack.c.l.b16 %v124
    %v225 = vunpack.c.h.b16 %v124
    %v226 = vunpack.c.l.b16 %v125
    %v227 = vunpack.c.h.b16 %v125
    %v228 = vunpack.c.l.b16 %v126
    %v229 = vunpack.c.h.b16 %v126
    %v230 = vunpack.c.l.b16 %v127
    %v231 = vunpack.c.h.b16 %v127
    %v232 = vunpack.c.l.b16 %v128
    %v233 = vunpack.c.h.b16 %v128
    %v234 = vunpack.c.l.b16 %v129
    %v235 = vunpack.c.h.b16 %v129
    %v236 = vunpack.c.l.b16 %v130
    %v237 = vunpack.c.h.b16 %v130
    %v238 = vunpack.c.l.b16 %v131
    %v239 = vunpack.c.h.b16 %v131
    %v240 = vunpack.c.l.b16 %v132
    %v241 = vunpack.c.h.b16 %v132
    %v242 = vunpack.c.l.b16 %v133
    %v243 = vunpack.c.h.b16 %v133
    %v244 = vpack.c.b16 %v182, %v180
    %v245 = vpack.c.b16 %v183, %v181
    %v246 = vpack.c.b16 %v186, %v184
    %v247 = vpack.c.b16 %v187, %v185
    %v248 = vpack.c.b16 %v190, %v188
    %v249 = vpack.c.b16 %v191, %v189
    %v250 = vpack.c.b16 %v194, %v192
    %v251 = vpack.c.b16 %v195, %v193
    %v252 = vpack.c.b16 %v198, %v196
    %v253 = vpack.c.b16 %v199, %v197
    %v254 = vpack.c.b16 %v202, %v200
    %v255 = vpack.c.b16 %v203, %v201
    %v256 = vpack.c.b16 %v206, %v204
    %v257 = vpack.c.b16 %v207, %v205
    %v258 = vpack.c.b16 %v210, %v208
    %v259 = vpack.c.b16 %v211, %v209
    %v260 = vpack.c.b16 %v214, %v212
    %v261 = vpack.c.b16 %v215, %v213
    %v262 = vpack.c.b16 %v218, %v216
    %v263 = vpack.c.b16 %v219, %v217
    %v264 = vpack.c.b16 %v222, %v220
    %v265 = vpack.c.b16 %v223, %v221
    %v266 = vpack.c.b16 %v226, %v224
    %v267 = vpack.c.b16 %v227, %v225
    %v268 = vpack.c.b16 %v230, %v228
    %v269 = vpack.c.b16 %v231, %v229
    %v270 = vpack.c.b16 %v234, %v232
    %v271 = vpack.c.b16 %v235, %v233
    %v272 = vpack.c.b16 %v238, %v236
    %v273 = vpack.c.b16 %v239, %v237
    %v274 = vpack.c.b16 %v242, %v240
    %v275 = vpack.c.b16 %v243, %v241
    %308 = vmatprep.subr.bf16.mxu0 %v259
    %309 = vmatpush1.bf16.msra.mxu0 %v258
    %310 = vmatprep.subr.bf16.mxu0 %v257
    %311 = vmatpush1.bf16.msra.mxu0 %v256
    %312 = vmatprep.subr.bf16.mxu0 %v255
    %313 = vmatpush1.bf16.msra.mxu0 %v254
    %314 = vmatprep.subr.bf16.mxu0 %v253
    %315 = vmatpush1.bf16.msra.mxu0 %v252
    %316 = vmatprep.subr.bf16.mxu0 %v251
    %317 = vmatpush1.bf16.msra.mxu0 %v250
    %318 = vmatprep.subr.bf16.mxu0 %v249
    %319 = vmatpush1.bf16.msra.mxu0 %v248
    %320 = vmatprep.subr.bf16.mxu0 %v247
    %321 = vmatpush1.bf16.msra.mxu0 %v246
    %322 = vmatprep.subr.bf16.mxu0 %v245
    %323 = vmatpush1.bf16.msra.mxu0 %v244
    %324 = vmatprep.subr.bf16.mxu0 %v275
    %325 = vmatpush2.bf16.msra.mxu0 %v274
    %326 = vmatprep.subr.bf16.mxu0 %v273
    %327 = vmatpush2.bf16.msra.mxu0 %v272
    %328 = vmatprep.subr.bf16.mxu0 %v271
    %329 = vmatpush2.bf16.msra.mxu0 %v270
    %330 = vmatprep.subr.bf16.mxu0 %v269
    %331 = vmatpush2.bf16.msra.mxu0 %v268
    %332 = vmatprep.subr.bf16.mxu0 %v267
    %333 = vmatpush2.bf16.msra.mxu0 %v266
    %334 = vmatprep.subr.bf16.mxu0 %v265
    %335 = vmatpush2.bf16.msra.mxu0 %v264
    %336 = vmatprep.subr.bf16.mxu0 %v263
    %337 = vmatpush2.bf16.msra.mxu0 %v262
    %338 = vmatprep.subr.bf16.mxu0 %v261
    %339 = vmatpush2.bf16.msra.mxu0 %v260
    %340 = vmatprep.mubr.bf16.mxu0 %v136
    %341 = vmatmul.mubr.bf16.gmra.mxu0 %v135
    %v342 = vpop.f32.mrf.mxu0
    %v343 = vadd.f32 %v141, %v342
    %v344 = vpop.f32.mrf.mxu0
    %v345 = vadd.f32 %v145, %v344
    %v346 = vpop.f32.mrf.mxu0
    %v347 = vpop.f32.mrf.mxu0
    %348 = vdwg.mxu0
    %vm349 = vcmp.gt.f32.partialorder %v343, 0.0
    %vm350 = vcmp.gt.f32.partialorder %v345, 0.0
    %v351 = vmul.f32 %v343, 0.01
    %v352 = vmul.f32 %v345, 0.01
    %v353 = vsel %vm349, %v343, %v351
    %v354 = vsel %vm350, %v345, %v352
    %v355 = vld [vmem:[#allocation7] sm:$0xff]
    %v356 = vld [vmem:[#allocation7 + $0x8] sm:$0xff]
    %v357 = vld [vmem:[#allocation7 + $0x10] sm:$0xff]
    %v358 = vld [vmem:[#allocation7 + $0x18] sm:$0xff]
    %v359 = vld [vmem:[#allocation7 + $0x20] sm:$0xff]
    %v360 = vld [vmem:[#allocation7 + $0x28] sm:$0xff]
    %v361 = vld [vmem:[#allocation7 + $0x30] sm:$0xff]
    %v362 = vld [vmem:[#allocation7 + $0x38] sm:$0xff]
    %v363 = vld [vmem:[#allocation7 + $0x40] sm:$0xff]
    %v364 = vld [vmem:[#allocation7 + $0x48] sm:$0xff]
    %v365 = vld [vmem:[#allocation7 + $0x50] sm:$0xff]
    %v366 = vld [vmem:[#allocation7 + $0x58] sm:$0xff]
    %v367 = vld [vmem:[#allocation7 + $0x60] sm:$0xff]
    %v368 = vld [vmem:[#allocation7 + $0x68] sm:$0xff]
    %v369 = vld [vmem:[#allocation7 + $0x70] sm:$0xff]
    %v370 = vld [vmem:[#allocation7 + $0x78] sm:$0xff]
    %v371 = vld [vmem:[#allocation7 + $0x80] sm:$0xff]
    %v372 = vld [vmem:[#allocation7 + $0x88] sm:$0xff]
    %v373 = vld [vmem:[#allocation7 + $0x90] sm:$0xff]
    %v374 = vld [vmem:[#allocation7 + $0x98] sm:$0xff]
    %v375 = vld [vmem:[#allocation7 + $0xa0] sm:$0xff]
    %v376 = vld [vmem:[#allocation7 + $0xa8] sm:$0xff]
    %v377 = vld [vmem:[#allocation7 + $0xb0] sm:$0xff]
    %v378 = vld [vmem:[#allocation7 + $0xb8] sm:$0xff]
    %v379 = vld [vmem:[#allocation7 + $0xc0] sm:$0xff]
    %v380 = vld [vmem:[#allocation7 + $0xc8] sm:$0xff]
    %v381 = vld [vmem:[#allocation7 + $0xd0] sm:$0xff]
    %v382 = vld [vmem:[#allocation7 + $0xd8] sm:$0xff]
    %v383 = vld [vmem:[#allocation7 + $0xe0] sm:$0xff]
    %v384 = vld [vmem:[#allocation7 + $0xe8] sm:$0xff]
    %v385 = vld [vmem:[#allocation7 + $0xf0] sm:$0xff]
    %v386 = vld [vmem:[#allocation7 + $0xf8] sm:$0xff]
    %v387 = vld [vmem:[%s4] sm:$0x3]
    %v388 = vpack.c.bf16 %v353, %v353
    %v389 = vpack.c.bf16 %v354, %v354
    %v391 = vlaneseq
    %v392 = vshrl.u32 %v391, 7
    %v393 = vsub.s32 0, %v392
    %v394 = vrot.slane %v387, %v393
    %v395 = vlaneseq
    %v396 = vshrl.u32 %v395, 7
    %v397 = vsub.s32 1, %v396
    %v398 = vrot.slane %v387, %v397
    %v433 = vunpack.c.l.b16 %v355
    %v434 = vunpack.c.h.b16 %v355
    %v435 = vunpack.c.l.b16 %v356
    %v436 = vunpack.c.h.b16 %v356
    %v437 = vunpack.c.l.b16 %v357
    %v438 = vunpack.c.h.b16 %v357
    %v439 = vunpack.c.l.b16 %v358
    %v440 = vunpack.c.h.b16 %v358
    %v441 = vunpack.c.l.b16 %v359
    %v442 = vunpack.c.h.b16 %v359
    %v443 = vunpack.c.l.b16 %v360
    %v444 = vunpack.c.h.b16 %v360
    %v445 = vunpack.c.l.b16 %v361
    %v446 = vunpack.c.h.b16 %v361
    %v447 = vunpack.c.l.b16 %v362
    %v448 = vunpack.c.h.b16 %v362
    %v449 = vunpack.c.l.b16 %v363
    %v450 = vunpack.c.h.b16 %v363
    %v451 = vunpack.c.l.b16 %v364
    %v452 = vunpack.c.h.b16 %v364
    %v453 = vunpack.c.l.b16 %v365
    %v454 = vunpack.c.h.b16 %v365
    %v455 = vunpack.c.l.b16 %v366
    %v456 = vunpack.c.h.b16 %v366
    %v457 = vunpack.c.l.b16 %v367
    %v458 = vunpack.c.h.b16 %v367
    %v459 = vunpack.c.l.b16 %v368
    %v460 = vunpack.c.h.b16 %v368
    %v461 = vunpack.c.l.b16 %v369
    %v462 = vunpack.c.h.b16 %v369
    %v463 = vunpack.c.l.b16 %v370
    %v464 = vunpack.c.h.b16 %v370
    %v465 = vunpack.c.l.b16 %v371
    %v466 = vunpack.c.h.b16 %v371
    %v467 = vunpack.c.l.b16 %v372
    %v468 = vunpack.c.h.b16 %v372
    %v469 = vunpack.c.l.b16 %v373
    %v470 = vunpack.c.h.b16 %v373
    %v471 = vunpack.c.l.b16 %v374
    %v472 = vunpack.c.h.b16 %v374
    %v473 = vunpack.c.l.b16 %v375
    %v474 = vunpack.c.h.b16 %v375
    %v475 = vunpack.c.l.b16 %v376
    %v476 = vunpack.c.h.b16 %v376
    %v477 = vunpack.c.l.b16 %v377
    %v478 = vunpack.c.h.b16 %v377
    %v479 = vunpack.c.l.b16 %v378
    %v480 = vunpack.c.h.b16 %v378
    %v481 = vunpack.c.l.b16 %v379
    %v482 = vunpack.c.h.b16 %v379
    %v483 = vunpack.c.l.b16 %v380
    %v484 = vunpack.c.h.b16 %v380
    %v485 = vunpack.c.l.b16 %v381
    %v486 = vunpack.c.h.b16 %v381
    %v487 = vunpack.c.l.b16 %v382
    %v488 = vunpack.c.h.b16 %v382
    %v489 = vunpack.c.l.b16 %v383
    %v490 = vunpack.c.h.b16 %v383
    %v491 = vunpack.c.l.b16 %v384
    %v492 = vunpack.c.h.b16 %v384
    %v493 = vunpack.c.l.b16 %v385
    %v494 = vunpack.c.h.b16 %v385
    %v495 = vunpack.c.l.b16 %v386
    %v496 = vunpack.c.h.b16 %v386
    %v497 = vpack.c.b16 %v435, %v433
    %v498 = vpack.c.b16 %v436, %v434
    %v499 = vpack.c.b16 %v439, %v437
    %v500 = vpack.c.b16 %v440, %v438
    %v501 = vpack.c.b16 %v443, %v441
    %v502 = vpack.c.b16 %v444, %v442
    %v503 = vpack.c.b16 %v447, %v445
    %v504 = vpack.c.b16 %v448, %v446
    %v505 = vpack.c.b16 %v451, %v449
    %v506 = vpack.c.b16 %v452, %v450
    %v507 = vpack.c.b16 %v455, %v453
    %v508 = vpack.c.b16 %v456, %v454
    %v509 = vpack.c.b16 %v459, %v457
    %v510 = vpack.c.b16 %v460, %v458
    %v511 = vpack.c.b16 %v463, %v461
    %v512 = vpack.c.b16 %v464, %v462
    %v513 = vpack.c.b16 %v467, %v465
    %v514 = vpack.c.b16 %v468, %v466
    %v515 = vpack.c.b16 %v471, %v469
    %v516 = vpack.c.b16 %v472, %v470
    %v517 = vpack.c.b16 %v475, %v473
    %v518 = vpack.c.b16 %v476, %v474
    %v519 = vpack.c.b16 %v479, %v477
    %v520 = vpack.c.b16 %v480, %v478
    %v521 = vpack.c.b16 %v483, %v481
    %v522 = vpack.c.b16 %v484, %v482
    %v523 = vpack.c.b16 %v487, %v485
    %v524 = vpack.c.b16 %v488, %v486
    %v525 = vpack.c.b16 %v491, %v489
    %v526 = vpack.c.b16 %v492, %v490
    %v527 = vpack.c.b16 %v495, %v493
    %v528 = vpack.c.b16 %v496, %v494
    %561 = vmatprep.subr.bf16.mxu0 %v512
    %562 = vmatpush1.bf16.msra.mxu0 %v511
    %563 = vmatprep.subr.bf16.mxu0 %v510
    %564 = vmatpush1.bf16.msra.mxu0 %v509
    %565 = vmatprep.subr.bf16.mxu0 %v508
    %566 = vmatpush1.bf16.msra.mxu0 %v507
    %567 = vmatprep.subr.bf16.mxu0 %v506
    %568 = vmatpush1.bf16.msra.mxu0 %v505
    %569 = vmatprep.subr.bf16.mxu0 %v504
    %570 = vmatpush1.bf16.msra.mxu0 %v503
    %571 = vmatprep.subr.bf16.mxu0 %v502
    %572 = vmatpush1.bf16.msra.mxu0 %v501
    %573 = vmatprep.subr.bf16.mxu0 %v500
    %574 = vmatpush1.bf16.msra.mxu0 %v499
    %575 = vmatprep.subr.bf16.mxu0 %v498
    %576 = vmatpush1.bf16.msra.mxu0 %v497
    %577 = vmatprep.subr.bf16.mxu0 %v528
    %578 = vmatpush2.bf16.msra.mxu0 %v527
    %579 = vmatprep.subr.bf16.mxu0 %v526
    %580 = vmatpush2.bf16.msra.mxu0 %v525
    %581 = vmatprep.subr.bf16.mxu0 %v524
    %582 = vmatpush2.bf16.msra.mxu0 %v523
    %583 = vmatprep.subr.bf16.mxu0 %v522
    %584 = vmatpush2.bf16.msra.mxu0 %v521
    %585 = vmatprep.subr.bf16.mxu0 %v520
    %586 = vmatpush2.bf16.msra.mxu0 %v519
    %587 = vmatprep.subr.bf16.mxu0 %v518
    %588 = vmatpush2.bf16.msra.mxu0 %v517
    %589 = vmatprep.subr.bf16.mxu0 %v516
    %590 = vmatpush2.bf16.msra.mxu0 %v515
    %591 = vmatprep.subr.bf16.mxu0 %v514
    %592 = vmatpush2.bf16.msra.mxu0 %v513
    %593 = vmatprep.mubr.bf16.mxu0 %v389
    %594 = vmatmul.mubr.bf16.gmra.mxu0 %v388
    %v595 = vpop.f32.mrf.mxu0
    %v596 = vadd.f32 %v394, %v595
    %v597 = vpop.f32.mrf.mxu0
    %v598 = vadd.f32 %v398, %v597
    %v599 = vpop.f32.mrf.mxu0
    %v600 = vpop.f32.mrf.mxu0
    %601 = vdwg.mxu0
    %v602 = vadd.f32 %v596, %v100
    %v603 = vadd.f32 %v598, %v101
    %v604 = vmax.f32 %v602, 0.0
    %v605 = vmax.f32 %v603, 0.0
    %v606 = vld [vmem:[#allocation8] sm:$0xff]
    %v607 = vld [vmem:[#allocation8 + $0x8] sm:$0xff]
    %v608 = vld [vmem:[#allocation8 + $0x10] sm:$0xff]
    %v609 = vld [vmem:[#allocation8 + $0x18] sm:$0xff]
    %v610 = vld [vmem:[#allocation8 + $0x20] sm:$0xff]
    %v611 = vld [vmem:[#allocation8 + $0x28] sm:$0xff]
    %v612 = vld [vmem:[#allocation8 + $0x30] sm:$0xff]
    %v613 = vld [vmem:[#allocation8 + $0x38] sm:$0xff]
    %v614 = vld [vmem:[#allocation8 + $0x40] sm:$0xff]
    %v615 = vld [vmem:[#allocation8 + $0x48] sm:$0xff]
    %v616 = vld [vmem:[#allocation8 + $0x50] sm:$0xff]
    %v617 = vld [vmem:[#allocation8 + $0x58] sm:$0xff]
    %v618 = vld [vmem:[#allocation8 + $0x60] sm:$0xff]
    %v619 = vld [vmem:[#allocation8 + $0x68] sm:$0xff]
    %v620 = vld [vmem:[#allocation8 + $0x70] sm:$0xff]
    %v621 = vld [vmem:[#allocation8 + $0x78] sm:$0xff]
    %v622 = vld [vmem:[#allocation8 + $0x80] sm:$0xff]
    %v623 = vld [vmem:[#allocation8 + $0x88] sm:$0xff]
    %v624 = vld [vmem:[#allocation8 + $0x90] sm:$0xff]
    %v625 = vld [vmem:[#allocation8 + $0x98] sm:$0xff]
    %v626 = vld [vmem:[#allocation8 + $0xa0] sm:$0xff]
    %v627 = vld [vmem:[#allocation8 + $0xa8] sm:$0xff]
    %v628 = vld [vmem:[#allocation8 + $0xb0] sm:$0xff]
    %v629 = vld [vmem:[#allocation8 + $0xb8] sm:$0xff]
    %v630 = vld [vmem:[#allocation8 + $0xc0] sm:$0xff]
    %v631 = vld [vmem:[#allocation8 + $0xc8] sm:$0xff]
    %v632 = vld [vmem:[#allocation8 + $0xd0] sm:$0xff]
    %v633 = vld [vmem:[#allocation8 + $0xd8] sm:$0xff]
    %v634 = vld [vmem:[#allocation8 + $0xe0] sm:$0xff]
    %v635 = vld [vmem:[#allocation8 + $0xe8] sm:$0xff]
    %v636 = vld [vmem:[#allocation8 + $0xf0] sm:$0xff]
    %v637 = vld [vmem:[#allocation8 + $0xf8] sm:$0xff]
    %v638 = vld [vmem:[%s6] sm:$0x3]
    %v639 = vpack.c.bf16 %v604, %v604
    %v640 = vpack.c.bf16 %v605, %v605
    %v642 = vlaneseq
    %v643 = vshrl.u32 %v642, 7
    %v644 = vsub.s32 0, %v643
    %v645 = vrot.slane %v638, %v644
    %v646 = vlaneseq
    %v647 = vshrl.u32 %v646, 7
    %v648 = vsub.s32 1, %v647
    %v649 = vrot.slane %v638, %v648
    %v684 = vunpack.c.l.b16 %v606
    %v685 = vunpack.c.h.b16 %v606
    %v686 = vunpack.c.l.b16 %v607
    %v687 = vunpack.c.h.b16 %v607
    %v688 = vunpack.c.l.b16 %v608
    %v689 = vunpack.c.h.b16 %v608
    %v690 = vunpack.c.l.b16 %v609
    %v691 = vunpack.c.h.b16 %v609
    %v692 = vunpack.c.l.b16 %v610
    %v693 = vunpack.c.h.b16 %v610
    %v694 = vunpack.c.l.b16 %v611
    %v695 = vunpack.c.h.b16 %v611
    %v696 = vunpack.c.l.b16 %v612
    %v697 = vunpack.c.h.b16 %v612
    %v698 = vunpack.c.l.b16 %v613
    %v699 = vunpack.c.h.b16 %v613
    %v700 = vunpack.c.l.b16 %v614
    %v701 = vunpack.c.h.b16 %v614
    %v702 = vunpack.c.l.b16 %v615
    %v703 = vunpack.c.h.b16 %v615
    %v704 = vunpack.c.l.b16 %v616
    %v705 = vunpack.c.h.b16 %v616
    %v706 = vunpack.c.l.b16 %v617
    %v707 = vunpack.c.h.b16 %v617
    %v708 = vunpack.c.l.b16 %v618
    %v709 = vunpack.c.h.b16 %v618
    %v710 = vunpack.c.l.b16 %v619
    %v711 = vunpack.c.h.b16 %v619
    %v712 = vunpack.c.l.b16 %v620
    %v713 = vunpack.c.h.b16 %v620
    %v714 = vunpack.c.l.b16 %v621
    %v715 = vunpack.c.h.b16 %v621
    %v716 = vunpack.c.l.b16 %v622
    %v717 = vunpack.c.h.b16 %v622
    %v718 = vunpack.c.l.b16 %v623
    %v719 = vunpack.c.h.b16 %v623
    %v720 = vunpack.c.l.b16 %v624
    %v721 = vunpack.c.h.b16 %v624
    %v722 = vunpack.c.l.b16 %v625
    %v723 = vunpack.c.h.b16 %v625
    %v724 = vunpack.c.l.b16 %v626
    %v725 = vunpack.c.h.b16 %v626
    %v726 = vunpack.c.l.b16 %v627
    %v727 = vunpack.c.h.b16 %v627
    %v728 = vunpack.c.l.b16 %v628
    %v729 = vunpack.c.h.b16 %v628
    %v730 = vunpack.c.l.b16 %v629
    %v731 = vunpack.c.h.b16 %v629
    %v732 = vunpack.c.l.b16 %v630
    %v733 = vunpack.c.h.b16 %v630
    %v734 = vunpack.c.l.b16 %v631
    %v735 = vunpack.c.h.b16 %v631
    %v736 = vunpack.c.l.b16 %v632
    %v737 = vunpack.c.h.b16 %v632
    %v738 = vunpack.c.l.b16 %v633
    %v739 = vunpack.c.h.b16 %v633
    %v740 = vunpack.c.l.b16 %v634
    %v741 = vunpack.c.h.b16 %v634
    %v742 = vunpack.c.l.b16 %v635
    %v743 = vunpack.c.h.b16 %v635
    %v744 = vunpack.c.l.b16 %v636
    %v745 = vunpack.c.h.b16 %v636
    %v746 = vunpack.c.l.b16 %v637
    %v747 = vunpack.c.h.b16 %v637
    %v748 = vpack.c.b16 %v686, %v684
    %v749 = vpack.c.b16 %v687, %v685
    %v750 = vpack.c.b16 %v690, %v688
    %v751 = vpack.c.b16 %v691, %v689
    %v752 = vpack.c.b16 %v694, %v692
    %v753 = vpack.c.b16 %v695, %v693
    %v754 = vpack.c.b16 %v698, %v696
    %v755 = vpack.c.b16 %v699, %v697
    %v756 = vpack.c.b16 %v702, %v700
    %v757 = vpack.c.b16 %v703, %v701
    %v758 = vpack.c.b16 %v706, %v704
    %v759 = vpack.c.b16 %v707, %v705
    %v760 = vpack.c.b16 %v710, %v708
    %v761 = vpack.c.b16 %v711, %v709
    %v762 = vpack.c.b16 %v714, %v712
    %v763 = vpack.c.b16 %v715, %v713
    %v764 = vpack.c.b16 %v718, %v716
    %v765 = vpack.c.b16 %v719, %v717
    %v766 = vpack.c.b16 %v722, %v720
    %v767 = vpack.c.b16 %v723, %v721
    %v768 = vpack.c.b16 %v726, %v724
    %v769 = vpack.c.b16 %v727, %v725
    %v770 = vpack.c.b16 %v730, %v728
    %v771 = vpack.c.b16 %v731, %v729
    %v772 = vpack.c.b16 %v734, %v732
    %v773 = vpack.c.b16 %v735, %v733
    %v774 = vpack.c.b16 %v738, %v736
    %v775 = vpack.c.b16 %v739, %v737
    %v776 = vpack.c.b16 %v742, %v740
    %v777 = vpack.c.b16 %v743, %v741
    %v778 = vpack.c.b16 %v746, %v744
    %v779 = vpack.c.b16 %v747, %v745
    %812 = vmatprep.subr.bf16.mxu0 %v763
    %813 = vmatpush1.bf16.msra.mxu0 %v762
    %814 = vmatprep.subr.bf16.mxu0 %v761
    %815 = vmatpush1.bf16.msra.mxu0 %v760
    %816 = vmatprep.subr.bf16.mxu0 %v759
    %817 = vmatpush1.bf16.msra.mxu0 %v758
    %818 = vmatprep.subr.bf16.mxu0 %v757
    %819 = vmatpush1.bf16.msra.mxu0 %v756
    %820 = vmatprep.subr.bf16.mxu0 %v755
    %821 = vmatpush1.bf16.msra.mxu0 %v754
    %822 = vmatprep.subr.bf16.mxu0 %v753
    %823 = vmatpush1.bf16.msra.mxu0 %v752
    %824 = vmatprep.subr.bf16.mxu0 %v751
    %825 = vmatpush1.bf16.msra.mxu0 %v750
    %826 = vmatprep.subr.bf16.mxu0 %v749
    %827 = vmatpush1.bf16.msra.mxu0 %v748
    %828 = vmatprep.subr.bf16.mxu0 %v779
    %829 = vmatpush2.bf16.msra.mxu0 %v778
    %830 = vmatprep.subr.bf16.mxu0 %v777
    %831 = vmatpush2.bf16.msra.mxu0 %v776
    %832 = vmatprep.subr.bf16.mxu0 %v775
    %833 = vmatpush2.bf16.msra.mxu0 %v774
    %834 = vmatprep.subr.bf16.mxu0 %v773
    %835 = vmatpush2.bf16.msra.mxu0 %v772
    %836 = vmatprep.subr.bf16.mxu0 %v771
    %837 = vmatpush2.bf16.msra.mxu0 %v770
    %838 = vmatprep.subr.bf16.mxu0 %v769
    %839 = vmatpush2.bf16.msra.mxu0 %v768
    %840 = vmatprep.subr.bf16.mxu0 %v767
    %841 = vmatpush2.bf16.msra.mxu0 %v766
    %842 = vmatprep.subr.bf16.mxu0 %v765
    %843 = vmatpush2.bf16.msra.mxu0 %v764
    %844 = vmatprep.mubr.bf16.mxu0 %v640
    %845 = vmatmul.mubr.bf16.gmra.mxu0 %v639
    %v846 = vpop.f32.mrf.mxu0
    %v847 = vadd.f32 %v645, %v846
    %v848 = vpop.f32.mrf.mxu0
    %v849 = vadd.f32 %v649, %v848
    %v850 = vpop.f32.mrf.mxu0
    %v851 = vpop.f32.mrf.mxu0
    %852 = vdwg.mxu0
    %vm853 = vcmp.gt.f32.partialorder %v847, 0.0
    %vm854 = vcmp.gt.f32.partialorder %v849, 0.0
    %v855 = vmul.f32 %v847, 0.01
    %v856 = vmul.f32 %v849, 0.01
    %v857 = vsel %vm853, %v847, %v855
    %v858 = vsel %vm854, %v849, %v856
    %v859 = vld [vmem:[#allocation10] sm:$0xf]
    %v860 = vld [vmem:[#allocation10 + $0x4] sm:$0xf]
    %v861 = vld [vmem:[#allocation10 + $0x8] sm:$0xf]
    %v862 = vld [vmem:[#allocation10 + $0xc] sm:$0xf]
    %v863 = vld [vmem:[#allocation10 + $0x10] sm:$0xf]
    %v864 = vld [vmem:[#allocation10 + $0x14] sm:$0xf]
    %v865 = vld [vmem:[#allocation10 + $0x18] sm:$0xf]
    %v866 = vld [vmem:[#allocation10 + $0x1c] sm:$0xf]
    %v867 = vld [vmem:[#allocation10 + $0x20] sm:$0xf]
    %v868 = vld [vmem:[#allocation10 + $0x24] sm:$0xf]
    %v869 = vld [vmem:[#allocation10 + $0x28] sm:$0xf]
    %v870 = vld [vmem:[#allocation10 + $0x2c] sm:$0xf]
    %v871 = vld [vmem:[#allocation10 + $0x30] sm:$0xf]
    %v872 = vld [vmem:[#allocation10 + $0x34] sm:$0xf]
    %v873 = vld [vmem:[#allocation10 + $0x38] sm:$0xf]
    %v874 = vld [vmem:[#allocation10 + $0x3c] sm:$0xf]
    %v875 = vld [vmem:[#allocation10 + $0x40] sm:$0xf]
    %v876 = vld [vmem:[#allocation10 + $0x44] sm:$0xf]
    %v877 = vld [vmem:[#allocation10 + $0x48] sm:$0xf]
    %v878 = vld [vmem:[#allocation10 + $0x4c] sm:$0xf]
    %v879 = vld [vmem:[#allocation10 + $0x50] sm:$0xf]
    %v880 = vld [vmem:[#allocation10 + $0x54] sm:$0xf]
    %v881 = vld [vmem:[#allocation10 + $0x58] sm:$0xf]
    %v882 = vld [vmem:[#allocation10 + $0x5c] sm:$0xf]
    %v883 = vld [vmem:[#allocation10 + $0x60] sm:$0xf]
    %v884 = vld [vmem:[#allocation10 + $0x64] sm:$0xf]
    %v885 = vld [vmem:[#allocation10 + $0x68] sm:$0xf]
    %v886 = vld [vmem:[#allocation10 + $0x6c] sm:$0xf]
    %v887 = vld [vmem:[#allocation10 + $0x70] sm:$0xf]
    %v888 = vld [vmem:[#allocation10 + $0x74] sm:$0xf]
    %v889 = vld [vmem:[#allocation10 + $0x78] sm:$0xf]
    %v890 = vld [vmem:[#allocation10 + $0x7c] sm:$0xf]
    %v891 = vld [vmem:[%s8] sm:$0x1]
    %v892 = vpack.c.bf16 %v857, %v857
    %v893 = vpack.c.bf16 %v858, %v858
    %v895 = vlaneseq
    %v896 = vshrl.u32 %v895, 7
    %v897 = vsub.s32 0, %v896
    %v898 = vrot.slane %v891, %v897
    %v932 = vunpack.c.l.b16 %v859
    %v933 = vunpack.c.l.b16 %v860
    %v934 = vunpack.c.l.b16 %v861
    %v935 = vunpack.c.l.b16 %v862
    %v936 = vunpack.c.l.b16 %v863
    %v937 = vunpack.c.l.b16 %v864
    %v938 = vunpack.c.l.b16 %v865
    %v939 = vunpack.c.l.b16 %v866
    %v940 = vunpack.c.l.b16 %v867
    %v941 = vunpack.c.l.b16 %v868
    %v942 = vunpack.c.l.b16 %v869
    %v943 = vunpack.c.l.b16 %v870
    %v944 = vunpack.c.l.b16 %v871
    %v945 = vunpack.c.l.b16 %v872
    %v946 = vunpack.c.l.b16 %v873
    %v947 = vunpack.c.l.b16 %v874
    %v948 = vunpack.c.l.b16 %v875
    %v949 = vunpack.c.l.b16 %v876
    %v950 = vunpack.c.l.b16 %v877
    %v951 = vunpack.c.l.b16 %v878
    %v952 = vunpack.c.l.b16 %v879
    %v953 = vunpack.c.l.b16 %v880
    %v954 = vunpack.c.l.b16 %v881
    %v955 = vunpack.c.l.b16 %v882
    %v956 = vunpack.c.l.b16 %v883
    %v957 = vunpack.c.l.b16 %v884
    %v958 = vunpack.c.l.b16 %v885
    %v959 = vunpack.c.l.b16 %v886
    %v960 = vunpack.c.l.b16 %v887
    %v961 = vunpack.c.l.b16 %v888
    %v962 = vunpack.c.l.b16 %v889
    %v963 = vunpack.c.l.b16 %v890
    %v964 = vpack.c.b16 %v933, %v932
    %v965 = vpack.c.b16 %v935, %v934
    %v966 = vpack.c.b16 %v937, %v936
    %v967 = vpack.c.b16 %v939, %v938
    %v968 = vpack.c.b16 %v941, %v940
    %v969 = vpack.c.b16 %v943, %v942
    %v970 = vpack.c.b16 %v945, %v944
    %v971 = vpack.c.b16 %v947, %v946
    %v972 = vpack.c.b16 %v949, %v948
    %v973 = vpack.c.b16 %v951, %v950
    %v974 = vpack.c.b16 %v953, %v952
    %v975 = vpack.c.b16 %v955, %v954
    %v976 = vpack.c.b16 %v957, %v956
    %v977 = vpack.c.b16 %v959, %v958
    %v978 = vpack.c.b16 %v961, %v960
    %v979 = vpack.c.b16 %v963, %v962
    %996 = vmatprep.subr.bf16.mxu0 0
    %997 = vmatpush1.bf16.msra.mxu0 %v971
    %998 = vmatprep.subr.bf16.mxu0 0
    %999 = vmatpush1.bf16.msra.mxu0 %v970
    %1000 = vmatprep.subr.bf16.mxu0 0
    %1001 = vmatpush1.bf16.msra.mxu0 %v969
    %1002 = vmatprep.subr.bf16.mxu0 0
    %1003 = vmatpush1.bf16.msra.mxu0 %v968
    %1004 = vmatprep.subr.bf16.mxu0 0
    %1005 = vmatpush1.bf16.msra.mxu0 %v967
    %1006 = vmatprep.subr.bf16.mxu0 0
    %1007 = vmatpush1.bf16.msra.mxu0 %v966
    %1008 = vmatprep.subr.bf16.mxu0 0
    %1009 = vmatpush1.bf16.msra.mxu0 %v965
    %1010 = vmatprep.subr.bf16.mxu0 0
    %1011 = vmatpush1.bf16.msra.mxu0 %v964
    %1012 = vmatprep.subr.bf16.mxu0 0
    %1013 = vmatpush2.bf16.msra.mxu0 %v979
    %1014 = vmatprep.subr.bf16.mxu0 0
    %1015 = vmatpush2.bf16.msra.mxu0 %v978
    %1016 = vmatprep.subr.bf16.mxu0 0
    %1017 = vmatpush2.bf16.msra.mxu0 %v977
    %1018 = vmatprep.subr.bf16.mxu0 0
    %1019 = vmatpush2.bf16.msra.mxu0 %v976
    %1020 = vmatprep.subr.bf16.mxu0 0
    %1021 = vmatpush2.bf16.msra.mxu0 %v975
    %1022 = vmatprep.subr.bf16.mxu0 0
    %1023 = vmatpush2.bf16.msra.mxu0 %v974
    %1024 = vmatprep.subr.bf16.mxu0 0
    %1025 = vmatpush2.bf16.msra.mxu0 %v973
    %1026 = vmatprep.subr.bf16.mxu0 0
    %1027 = vmatpush2.bf16.msra.mxu0 %v972
    %1028 = vmatprep.mubr.bf16.mxu0 %v893
    %1029 = vmatmul.mubr.bf16.gmra.mxu0 %v892
    %v1030 = vpop.f32.mrf.mxu0
    %v1031 = vadd.f32 %v898, %v1030
    %v1032 = vpop.f32.mrf.mxu0
    %v1033 = vpop.f32.mrf.mxu0
    %v1034 = vpop.f32.mrf.mxu0
    %1035 = vdwg.mxu0
    %v1036 = vtanh.pop %v1031
    %1037 = vst [vmem:[#allocation11] sm:$0xff] %v1036
    // Predicated region
    $region58: #{tpu_custom_call.1} parent=1 // pred_check
      _
    $region59: #{tpu_custom_call.1} parent=1 // pred_check_branch
      %1039 = sbr.rel (0) target = $region61
    $region60: #{tpu_custom_call.1} parent=1 // pred_region
      %s1041 = ssub.s32 128, 128
      %1042 = vsyncadd [#allocation4], %s1041
      %s1044 = sshll.u32 [#allocation11], 4
      %s1045 = int_to_ptr.vmem [resolvable:$true] %s1044
      %1047 = dma.vmem_to_hbm [thread:$0]  %s1045, 128, %s9, [#allocation4]
    $region61: #{tpu_custom_call.1} parent=1 // pred_fallthru
      _
    // Predicated region
    $region62: #{tpu_custom_call.1} parent=1 // pred_check
      _
    $region63: #{tpu_custom_call.1} parent=1 // pred_check_branch
      %1049 = sbr.rel (0) target = $region65
    $region64: #{tpu_custom_call.1} parent=1 // pred_region
      %1050 = dma.done [#allocation4], 128
    $region65: #{tpu_custom_call.1} parent=1 // pred_fallthru
      _
    %1051 = vsyncpa [#allocation3], 1
    %1052 = vsyncpa [#allocation6], 1
    %1053 = vsyncpa [#allocation9], 1
    %1054 = vsyncpa [#allocation4], 1

</llo_original>
